<compile_context>
chip_gen: v5e
topology: v5e:2x2
jax: 0.10.0
libtpu: 0.0.40
codegen_flags: <defaults>
</compile_context>

<pallas_src>
import jax
import jax.numpy as jnp
from jax.experimental import pallas as pl
from jax.experimental.pallas import tpu as pltpu

INPUT_SIZE = 40                 # L
NUM_CLASSES = 8
C_OUT = 64
K = 5                           # conv kernel size
PAD = 2                         # conv padding
CL = C_OUT * INPUT_SIZE         # 2560 flattened features (torch order: c*L + l)
L_AUG = 48                      # 40 data cols + 1 bias col + 7 zero cols (sublane-aligned K dim)
CHUNK = 512                     # CL chunk processed per inner step (CL % CHUNK == 0)


# ---------------- fused Pallas kernel ----------------

def fused_kernel(x_ref, wconv_ref, wfc_ref, bfc_ref, out_ref):
    # x_ref:     (TB, 40)   f32  one batch tile (layout as handed to the module)
    # wconv_ref: (2560, 48) bf16 banded Conv1d weights (rows = c*L+l), col 40 = conv bias, 41..47 = 0
    # wfc_ref:   (8, 2560)  bf16 fc.weight in torch layout
    # bfc_ref:   (8, 1)     f32  fc.bias as a column
    # out_ref:   (8, TB)    f32  transposed logits (lane-dense batch axis)
    TB = x_ref.shape[0]

    # Transpose the small x tile on the XLU and append the bias-fold rows:
    # row 40 = ones (multiplies the bias column of wconv), rows 41..47 = zeros.
    xt = jnp.transpose(x_ref[...])                                        # (40, TB) f32
    aug = (jax.lax.broadcasted_iota(jnp.int32, (L_AUG - INPUT_SIZE, TB), 0) == 0
           ).astype(jnp.float32)                                          # (8, TB): [1;0;...;0]
    xt_aug = jnp.concatenate([xt, aug], axis=0).astype(jnp.bfloat16)      # (48, TB), aligned concat

    acc = jnp.zeros((NUM_CLASSES, TB), jnp.float32)
    for c0 in range(0, CL, CHUNK):                                        # 5 static chunks of 512
        h = jnp.dot(wconv_ref[c0:c0 + CHUNK, :], xt_aug,
                    preferred_element_type=jnp.float32)                   # (CHUNK, TB) conv + bias
        h = jnp.maximum(h, 0.0).astype(jnp.bfloat16)                      # ReLU (+ bf16 for MXU)
        # TODO(synk): Dropout(p=0.2) is identity here (eval/inference mode); training parity would
        # need a pltpu.prng_seed/prng_random_bits mask and 1/(1-p) scaling.
        acc = acc + jnp.dot(wfc_ref[:, c0:c0 + CHUNK], h,
                            preferred_element_type=jnp.float32)           # (8, TB) partial FC
    out_ref[...] = acc + bfc_ref[...]                                     # fc bias (lane broadcast)


# ---------------- one-time weight preparation (hoisted out of the forward) ----------------

def _round_up(a, m):
    return ((a + m - 1) // m) * m


def fold_params(params):
    """One-time prepare step: fold Conv1d into a banded matrix (transposed, conv-bias column
    appended, zero-padded to 48 K-columns) and cast weights to bf16. Call once, reuse forever."""
    w1, b1, wfc, bfc = params["w1"], params["b1"], params["wfc"], params["bfc"]
    L = INPUT_SIZE
    # wconv[j, c*L + l] = w1[c, j + PAD - l] for 0 <= j+PAD-l < K else 0, so that
    # (x @ wconv)[b, c*L + l] == Conv1d(pad=2) output in torch flatten order.
    bands = jnp.stack([jnp.eye(L, L, k=PAD - t, dtype=jnp.float32) for t in range(K)], axis=0)
    wconv = jnp.einsum("ct,tjl->jcl", w1, bands).reshape(L, CL)            # (40, 2560)
    bias_col = jnp.repeat(b1, L).reshape(CL, 1)                            # (2560, 1), index c*L+l
    pad_cols = jnp.zeros((CL, L_AUG - L - 1), jnp.float32)                 # (2560, 7)
    wconv_aug = jnp.concatenate([wconv.T, bias_col, pad_cols], axis=1)     # (2560, 48)
    return {
        "wconv": wconv_aug.astype(jnp.bfloat16),
        "wfc": wfc.astype(jnp.bfloat16),                                   # (8, 2560) torch layout
        "bfc": bfc.reshape(NUM_CLASSES, 1).astype(jnp.float32),            # (8, 1)
    }


# ---------------- wrapper ----------------

def emotion_cnn_forward(x, folded, tb=512):
    """Inference (eval-mode) forward. x: (B, input_size, 1) f32, same layout the PyTorch module
    receives. Returns (B, NUM_CLASSES) f32 logits. `folded` comes from fold_params()."""
    B, L, _ = x.shape
    assert L == INPUT_SIZE
    xs = x.reshape(B, L)                        # drop trailing unit dim (no data movement)

    # Batch tiling: single step for small batches (block == full array dims); otherwise 128-multiple
    # tiles with >= 2 grid steps (v7x megacore sharding), padded batch only when actually tiled.
    if B < 256:
        TB, Bp = B, B
    else:
        TB = min(tb, _round_up(pl.cdiv(B, 2), 128))
        TB = max(128, (TB // 128) * 128)
        Bp = _round_up(B, TB)
    if Bp != B:
        xs = jnp.pad(xs, ((0, Bp - B), (0, 0)))
    nb = Bp // TB

    out_t = pl.pallas_call(
        fused_kernel,
        out_shape=jax.ShapeDtypeStruct((NUM_CLASSES, Bp), jnp.float32),
        grid=(nb,),
        in_specs=[
            pl.BlockSpec((TB, L), lambda b: (b, 0)),                       # x tile
            pl.BlockSpec((CL, L_AUG), lambda b: (0, 0)),                   # wconv (VMEM-resident)
            pl.BlockSpec((NUM_CLASSES, CL), lambda b: (0, 0)),             # wfc   (VMEM-resident)
            pl.BlockSpec((NUM_CLASSES, 1), lambda b: (0, 0)),              # bfc   (VMEM-resident)
        ],
        out_specs=pl.BlockSpec((NUM_CLASSES, TB), lambda b: (0, b)),       # lane-dense (8, TB)
        compiler_params=pltpu.CompilerParams(
            dimension_semantics=("parallel",)),                            # megacore on v7x
    )(xs, folded["wconv"], folded["wfc"], folded["bfc"])
    return out_t[:, :B].T                                                  # (B, 8)


# ---------------- params / reference ----------------

def init_params(key):
    k1, k2, k3, k4 = jax.random.split(key, 4)
    # torch-equivalent layouts:
    w1 = jax.random.normal(k1, (C_OUT, K), jnp.float32) * 0.1                    # conv1.weight.squeeze(1)
    b1 = jax.random.normal(k2, (C_OUT,), jnp.float32) * 0.1                      # conv1.bias
    wfc = jax.random.normal(k3, (NUM_CLASSES, CL), jnp.float32) * 0.02           # fc.weight
    bfc = jax.random.normal(k4, (NUM_CLASSES,), jnp.float32) * 0.02              # fc.bias
    return {"w1": w1, "b1": b1, "wfc": wfc, "bfc": bfc}


def reference_forward(x, params):
    """Pure-JAX f32 reference mirroring the PyTorch forward (eval mode)."""
    w1, b1, wfc, bfc = params["w1"], params["b1"], params["wfc"], params["bfc"]
    B, L, _ = x.shape
    xs = x[..., 0]
    xpad = jnp.pad(xs, ((0, 0), (PAD, PAD)))
    patches = jnp.stack([xpad[:, t:t + L] for t in range(K)], axis=1)            # (B, K, L)
    conv = jnp.einsum("ct,btl->bcl", w1, patches) + b1[None, :, None]            # (B, C, L)
    h = jnp.maximum(conv, 0.0).reshape(B, CL)                                    # flatten c*L + l
    return h @ wfc.T + bfc[None, :]


if __name__ == "__main__":
    key = jax.random.PRNGKey(0)
    kx, kp, kx2 = jax.random.split(key, 3)
    params = init_params(kp)
    folded = fold_params(params)          # one-time prepare step (hoisted out of the forward)

    # small input consistent with the module: (batch=2, input_size=40, channels=1)
    x = jax.random.normal(kx, (2, INPUT_SIZE, 1), jnp.float32)
    out = jax.block_until_ready(emotion_cnn_forward(x, folded))
    ref = reference_forward(x, params)
    assert out.shape == (2, NUM_CLASSES)
    # bf16 matmul operands (f32 accumulate) -> loosened tolerance vs the f32 reference
    assert jnp.allclose(out, ref, atol=5e-2, rtol=5e-2), "Pallas output mismatch vs reference"

    # exercise the tiled multi-step path (2 grid steps of TB=256, batch padded 300 -> 512)
    x2 = jax.random.normal(kx2, (300, INPUT_SIZE, 1), jnp.float32)
    out2 = jax.block_until_ready(emotion_cnn_forward(x2, folded))
    ref2 = reference_forward(x2, params)
    assert out2.shape == (300, NUM_CLASSES)
    assert jnp.allclose(out2, ref2, atol=5e-2, rtol=5e-2), "Pallas output mismatch vs reference (tiled)"

    print("KERNEL_OK")
</pallas_src>

<mosaic_0001>
module attributes {stable_mosaic.version = 11 : i64} {
  func.func @fused_kernel(%arg0: i32, %arg1: memref<2x40xf32, #tpu.memory_space<vmem>>, %arg2: memref<2560x48xbf16, #tpu.memory_space<vmem>>, %arg3: memref<8x2560xbf16, #tpu.memory_space<vmem>>, %arg4: memref<8x1xf32, #tpu.memory_space<vmem>>, %arg5: memref<8x2xf32, #tpu.memory_space<vmem>>) attributes {dimension_semantics = [#tpu.dimension_semantics<parallel>], iteration_bounds = array<i64: 1>, scalar_prefetch = 0 : i64, scratch_operands = 0 : i64, tpu.core_type = #tpu.core_type<tc>, window_params = [{transform_indices = @transform_0, window_bounds = array<i64: 2, 40>}, {pipeline_mode = #tpu.pipeline_mode<synchronous>, transform_indices = @transform_1, window_bounds = array<i64: 2560, 48>}, {pipeline_mode = #tpu.pipeline_mode<synchronous>, transform_indices = @transform_2, window_bounds = array<i64: 8, 2560>}, {pipeline_mode = #tpu.pipeline_mode<synchronous>, transform_indices = @transform_3, window_bounds = array<i64: 8, 1>}, {transform_indices = @transform_4, window_bounds = array<i64: 8, 2>}]} {
    %c0 = arith.constant 0 : index
    %c0_0 = arith.constant 0 : index
    %0 = vector.load %arg1[%c0, %c0_0] : memref<2x40xf32, #tpu.memory_space<vmem>>, vector<2x40xf32>
    %1 = tpu.transpose %0, [1, 0] : vector<2x40xf32> -> vector<40x2xf32>
    %2 = tpu.iota {dimensions = array<i32: 0>} : vector<8x2xi32>
    %c0_i32 = arith.constant 0 : i32
    %3 = vector.broadcast %c0_i32 : i32 to vector<8x2xi32>
    %4 = arith.cmpi eq, %2, %3 : vector<8x2xi32>
    %5 = arith.extui %4 : vector<8x2xi1> to vector<8x2xi32>
    %6 = arith.sitofp %5 : vector<8x2xi32> to vector<8x2xf32>
    %7 = tpu.concatenate %1, %6 in 0 : vector<40x2xf32>, vector<8x2xf32> -> vector<48x2xf32>
    %8 = arith.truncf %7 : vector<48x2xf32> to vector<48x2xbf16>
    %cst = arith.constant 0.000000e+00 : f32
    %9 = vector.broadcast %cst : f32 to vector<8x2xf32>
    %c0_1 = arith.constant 0 : index
    %c0_2 = arith.constant 0 : index
    %10 = vector.load %arg2[%c0_1, %c0_2] : memref<2560x48xbf16, #tpu.memory_space<vmem>>, vector<512x48xbf16>
    %cst_3 = arith.constant dense<0.000000e+00> : vector<512x2xf32>
    %11 = tpu.matmul %10, %8, %cst_3 {dimension_numbers = #tpu.dot_dimension_numbers<[1], [0], [0], [1], [0, 0, 1, 1], [], []>} : vector<512x48xbf16>, vector<48x2xbf16>, vector<512x2xf32> -> vector<512x2xf32>
    %cst_4 = arith.constant 0.000000e+00 : f32
    %12 = vector.broadcast %cst_4 : f32 to vector<512x2xf32>
    %13 = arith.maximumf %11, %12 : vector<512x2xf32>
    %14 = arith.truncf %13 : vector<512x2xf32> to vector<512x2xbf16>
    %c0_5 = arith.constant 0 : index
    %c0_6 = arith.constant 0 : index
    %15 = vector.load %arg3[%c0_5, %c0_6] : memref<8x2560xbf16, #tpu.memory_space<vmem>>, vector<8x512xbf16>
    %cst_7 = arith.constant dense<0.000000e+00> : vector<8x2xf32>
    %16 = tpu.matmul %15, %14, %cst_7 {dimension_numbers = #tpu.dot_dimension_numbers<[1], [0], [0], [1], [0, 0, 1, 1], [], []>} : vector<8x512xbf16>, vector<512x2xbf16>, vector<8x2xf32> -> vector<8x2xf32>
    %17 = arith.addf %9, %16 : vector<8x2xf32>
    %c512 = arith.constant 512 : index
    %c0_8 = arith.constant 0 : index
    %18 = vector.load %arg2[%c512, %c0_8] : memref<2560x48xbf16, #tpu.memory_space<vmem>>, vector<512x48xbf16>
    %cst_9 = arith.constant dense<0.000000e+00> : vector<512x2xf32>
    %19 = tpu.matmul %18, %8, %cst_9 {dimension_numbers = #tpu.dot_dimension_numbers<[1], [0], [0], [1], [0, 0, 1, 1], [], []>} : vector<512x48xbf16>, vector<48x2xbf16>, vector<512x2xf32> -> vector<512x2xf32>
    %cst_10 = arith.constant 0.000000e+00 : f32
    %20 = vector.broadcast %cst_10 : f32 to vector<512x2xf32>
    %21 = arith.maximumf %19, %20 : vector<512x2xf32>
    %22 = arith.truncf %21 : vector<512x2xf32> to vector<512x2xbf16>
    %c0_11 = arith.constant 0 : index
    %c512_12 = arith.constant 512 : index
    %23 = vector.load %arg3[%c0_11, %c512_12] : memref<8x2560xbf16, #tpu.memory_space<vmem>>, vector<8x512xbf16>
    %cst_13 = arith.constant dense<0.000000e+00> : vector<8x2xf32>
    %24 = tpu.matmul %23, %22, %cst_13 {dimension_numbers = #tpu.dot_dimension_numbers<[1], [0], [0], [1], [0, 0, 1, 1], [], []>} : vector<8x512xbf16>, vector<512x2xbf16>, vector<8x2xf32> -> vector<8x2xf32>
    %25 = arith.addf %17, %24 : vector<8x2xf32>
    %c1024 = arith.constant 1024 : index
    %c0_14 = arith.constant 0 : index
    %26 = vector.load %arg2[%c1024, %c0_14] : memref<2560x48xbf16, #tpu.memory_space<vmem>>, vector<512x48xbf16>
    %cst_15 = arith.constant dense<0.000000e+00> : vector<512x2xf32>
    %27 = tpu.matmul %26, %8, %cst_15 {dimension_numbers = #tpu.dot_dimension_numbers<[1], [0], [0], [1], [0, 0, 1, 1], [], []>} : vector<512x48xbf16>, vector<48x2xbf16>, vector<512x2xf32> -> vector<512x2xf32>
    %cst_16 = arith.constant 0.000000e+00 : f32
    %28 = vector.broadcast %cst_16 : f32 to vector<512x2xf32>
    %29 = arith.maximumf %27, %28 : vector<512x2xf32>
    %30 = arith.truncf %29 : vector<512x2xf32> to vector<512x2xbf16>
    %c0_17 = arith.constant 0 : index
    %c1024_18 = arith.constant 1024 : index
    %31 = vector.load %arg3[%c0_17, %c1024_18] : memref<8x2560xbf16, #tpu.memory_space<vmem>>, vector<8x512xbf16>
    %cst_19 = arith.constant dense<0.000000e+00> : vector<8x2xf32>
    %32 = tpu.matmul %31, %30, %cst_19 {dimension_numbers = #tpu.dot_dimension_numbers<[1], [0], [0], [1], [0, 0, 1, 1], [], []>} : vector<8x512xbf16>, vector<512x2xbf16>, vector<8x2xf32> -> vector<8x2xf32>
    %33 = arith.addf %25, %32 : vector<8x2xf32>
    %c1536 = arith.constant 1536 : index
    %c0_20 = arith.constant 0 : index
    %34 = vector.load %arg2[%c1536, %c0_20] : memref<2560x48xbf16, #tpu.memory_space<vmem>>, vector<512x48xbf16>
    %cst_21 = arith.constant dense<0.000000e+00> : vector<512x2xf32>
    %35 = tpu.matmul %34, %8, %cst_21 {dimension_numbers = #tpu.dot_dimension_numbers<[1], [0], [0], [1], [0, 0, 1, 1], [], []>} : vector<512x48xbf16>, vector<48x2xbf16>, vector<512x2xf32> -> vector<512x2xf32>
    %cst_22 = arith.constant 0.000000e+00 : f32
    %36 = vector.broadcast %cst_22 : f32 to vector<512x2xf32>
    %37 = arith.maximumf %35, %36 : vector<512x2xf32>
    %38 = arith.truncf %37 : vector<512x2xf32> to vector<512x2xbf16>
    %c0_23 = arith.constant 0 : index
    %c1536_24 = arith.constant 1536 : index
    %39 = vector.load %arg3[%c0_23, %c1536_24] : memref<8x2560xbf16, #tpu.memory_space<vmem>>, vector<8x512xbf16>
    %cst_25 = arith.constant dense<0.000000e+00> : vector<8x2xf32>
    %40 = tpu.matmul %39, %38, %cst_25 {dimension_numbers = #tpu.dot_dimension_numbers<[1], [0], [0], [1], [0, 0, 1, 1], [], []>} : vector<8x512xbf16>, vector<512x2xbf16>, vector<8x2xf32> -> vector<8x2xf32>
    %41 = arith.addf %33, %40 : vector<8x2xf32>
    %c2048 = arith.constant 2048 : index
    %c0_26 = arith.constant 0 : index
    %42 = vector.load %arg2[%c2048, %c0_26] : memref<2560x48xbf16, #tpu.memory_space<vmem>>, vector<512x48xbf16>
    %cst_27 = arith.constant dense<0.000000e+00> : vector<512x2xf32>
    %43 = tpu.matmul %42, %8, %cst_27 {dimension_numbers = #tpu.dot_dimension_numbers<[1], [0], [0], [1], [0, 0, 1, 1], [], []>} : vector<512x48xbf16>, vector<48x2xbf16>, vector<512x2xf32> -> vector<512x2xf32>
    %cst_28 = arith.constant 0.000000e+00 : f32
    %44 = vector.broadcast %cst_28 : f32 to vector<512x2xf32>
    %45 = arith.maximumf %43, %44 : vector<512x2xf32>
    %46 = arith.truncf %45 : vector<512x2xf32> to vector<512x2xbf16>
    %c0_29 = arith.constant 0 : index
    %c2048_30 = arith.constant 2048 : index
    %47 = vector.load %arg3[%c0_29, %c2048_30] : memref<8x2560xbf16, #tpu.memory_space<vmem>>, vector<8x512xbf16>
    %cst_31 = arith.constant dense<0.000000e+00> : vector<8x2xf32>
    %48 = tpu.matmul %47, %46, %cst_31 {dimension_numbers = #tpu.dot_dimension_numbers<[1], [0], [0], [1], [0, 0, 1, 1], [], []>} : vector<8x512xbf16>, vector<512x2xbf16>, vector<8x2xf32> -> vector<8x2xf32>
    %49 = arith.addf %41, %48 : vector<8x2xf32>
    %c0_32 = arith.constant 0 : index
    %c0_33 = arith.constant 0 : index
    %50 = vector.load %arg4[%c0_32, %c0_33] : memref<8x1xf32, #tpu.memory_space<vmem>>, vector<8x1xf32>
    %51 = vector.broadcast %50 : vector<8x1xf32> to vector<8x2xf32>
    %52 = arith.addf %49, %51 : vector<8x2xf32>
    %c0_34 = arith.constant 0 : index
    %c0_35 = arith.constant 0 : index
    %53 = vector.load %arg5[%c0_34, %c0_35] : memref<8x2xf32, #tpu.memory_space<vmem>>, vector<8x2xf32>
    tpu.vector_store %arg5[%c0_34, %c0_35], %52 {strides = array<i32>} : memref<8x2xf32, #tpu.memory_space<vmem>>, vector<8x2xf32>,
    return
  }
  func.func @transform_0(%arg0: i32) -> (i32, i32) {
    %c0_i32 = arith.constant 0 : i32
    %c0_i32_0 = arith.constant 0 : i32
    return %arg0, %c0_i32 : i32, i32
  }
  func.func @transform_1(%arg0: i32) -> (i32, i32) {
    %c0_i32 = arith.constant 0 : i32
    %c0_i32_0 = arith.constant 0 : i32
    %c0_i32_1 = arith.constant 0 : i32
    return %c0_i32, %c0_i32_0 : i32, i32
  }
  func.func @transform_2(%arg0: i32) -> (i32, i32) {
    %c0_i32 = arith.constant 0 : i32
    %c0_i32_0 = arith.constant 0 : i32
    %c0_i32_1 = arith.constant 0 : i32
    return %c0_i32, %c0_i32_0 : i32, i32
  }
  func.func @transform_3(%arg0: i32) -> (i32, i32) {
    %c0_i32 = arith.constant 0 : i32
    %c0_i32_0 = arith.constant 0 : i32
    %c0_i32_1 = arith.constant 0 : i32
    return %c0_i32, %c0_i32_0 : i32, i32
  }
  func.func @transform_4(%arg0: i32) -> (i32, i32) {
    %c0_i32 = arith.constant 0 : i32
    %c0_i32_0 = arith.constant 0 : i32
    return %c0_i32, %arg0 : i32, i32
  }
}

</mosaic_0001>

<llo_original>
// kernel: tpu_custom_call.1
$region0: #{tpu_custom_call.1}
  #allocation0 [shape = 'u32[]', space=smem, size = 0x4, offset = 0x4, fixed_abs, tag = 'smem constant byte address 0x4 - core index']
  #allocation1 [shape = 'u32[72,128]{1,0:T(1,128)}', space=vmem, size = 0x9000, scoped, tag = 'internal scratch']
  %s0 = inlined_call_operand.vmem [shape: f32[2,40], index: 0, kind: input, shape index: {}]
  %s1 = inlined_call_operand.vmem [shape: bf16[2560,48], index: 1, kind: input, shape index: {}]
  %s2 = inlined_call_operand.vmem [shape: bf16[8,2560], index: 2, kind: input, shape index: {}]
  %s3 = inlined_call_operand.vmem [shape: f32[8,1], index: 3, kind: input, shape index: {}]
  %s4 = inlined_call_operand.vmem [shape: f32[8,2], index: 4, kind: output, shape index: {}]
  %s5 = sld [smem:[#allocation0]]
  $region26: #{tpu_custom_call.1} parent=0
    _
  %s7 = ssub.s32 1, %s5
  %s8 = scalar_select 0, %s7, %s5
  // Predicated region
  $region2: #{tpu_custom_call.1} parent=0 // pred_check
    _
  $region3: #{tpu_custom_call.1} parent=0 // pred_check_branch
    %10 = sbr.rel (0) target = $region5
  $region4: #{tpu_custom_call.1} parent=0 // pred_region
    _
  $region5: #{tpu_custom_call.1} parent=0 // pred_fallthru
    _
  // Predicated region
  $region6: #{tpu_custom_call.1} parent=0 // pred_check
    _
  $region7: #{tpu_custom_call.1} parent=0 // pred_check_branch
    %12 = sbr.rel (0) target = $region9
  $region8: #{tpu_custom_call.1} parent=0 // pred_region
    _
  $region9: #{tpu_custom_call.1} parent=0 // pred_fallthru
    _
  // Predicated region
  $region10: #{tpu_custom_call.1} parent=0 // pred_check
    _
  $region11: #{tpu_custom_call.1} parent=0 // pred_check_branch
    %14 = sbr.rel (0) target = $region13
  $region12: #{tpu_custom_call.1} parent=0 // pred_region
    _
  $region13: #{tpu_custom_call.1} parent=0 // pred_fallthru
    _
  // Predicated region
  $region14: #{tpu_custom_call.1} parent=0 // pred_check
    _
  $region15: #{tpu_custom_call.1} parent=0 // pred_check_branch
    %16 = sbr.rel (0) target = $region17
  $region16: #{tpu_custom_call.1} parent=0 // pred_region
    _
  $region17: #{tpu_custom_call.1} parent=0 // pred_fallthru
    _
  %v18 = vld [vmem:[%s0] sm:$0x3]
  %19 = vxpose.xlu0.b32.start [1/16] %v18, 128
  %20 = vxpose.xlu0.b32.cont [2/16] 0.0, 128
  %21 = vxpose.xlu0.b32.cont [3/16] 0.0, 128
  %22 = vxpose.xlu0.b32.cont [4/16] 0.0, 128
  %23 = vxpose.xlu0.b32.cont [5/16] 0.0, 128
  %24 = vxpose.xlu0.b32.cont [6/16] 0.0, 128
  %25 = vxpose.xlu0.b32.cont [7/16] 0.0, 128
  %26 = vxpose.xlu0.b32.cont [8/16] 0.0, 128
  %27 = vxpose.xlu0.b32.cont [9/16] 0.0, 128
  %28 = vxpose.xlu0.b32.cont [10/16] 0.0, 128
  %29 = vxpose.xlu0.b32.cont [11/16] 0.0, 128
  %30 = vxpose.xlu0.b32.cont [12/16] 0.0, 128
  %31 = vxpose.xlu0.b32.cont [13/16] 0.0, 128
  %32 = vxpose.xlu0.b32.cont [14/16] 0.0, 128
  %33 = vxpose.xlu0.b32.cont [15/16] 0.0, 128
  %34 = vxpose.xlu0.b32.end [16/16] 0.0, 128
  %v35 = vpop.trf.xlu0
  %v36 = vpop.trf.xlu0
  %v37 = vpop.trf.xlu0
  %v38 = vpop.trf.xlu0
  %v39 = vpop.trf.xlu0
  %v40 = vpop.trf.xlu0
  %v41 = vpop.trf.xlu0
  %v42 = vpop.trf.xlu0
  %v43 = vpop.trf.xlu0
  %v44 = vpop.trf.xlu0
  %v45 = vpop.trf.xlu0
  %v46 = vpop.trf.xlu0
  %v47 = vpop.trf.xlu0
  %v48 = vpop.trf.xlu0
  %v49 = vpop.trf.xlu0
  %v50 = vpop.trf.xlu0
  %v51 = vlaneseq
  %v52 = vshrl.u32 %v51, 7
  %vm53 = vcmp.eq.s32.totalorder %v52, 0
  %v54 = vsel %vm53, 1, 0
  %v55 = vcvt.s32.f32 %v54
  %v56 = vpack.c.bf16 %v36, %v35
  %v57 = vpack.c.bf16 %v38, %v37
  %v58 = vpack.c.bf16 %v55, %v39
  %v59 = vld [vmem:[%s1] sm:$0xf]
  %v60 = vld [vmem:[%s1 + $0x4] sm:$0xf]
  %v61 = vld [vmem:[%s1 + $0x8] sm:$0xf]
  %v62 = vld [vmem:[%s1 + $0xc] sm:$0xf]
  %v63 = vld [vmem:[%s1 + $0x10] sm:$0xf]
  %v64 = vld [vmem:[%s1 + $0x14] sm:$0xf]
  %v65 = vld [vmem:[%s1 + $0x18] sm:$0xf]
  %v66 = vld [vmem:[%s1 + $0x1c] sm:$0xf]
  %v67 = vld [vmem:[%s1 + $0x20] sm:$0xf]
  %v68 = vld [vmem:[%s1 + $0x24] sm:$0xf]
  %v69 = vld [vmem:[%s1 + $0x28] sm:$0xf]
  %v70 = vld [vmem:[%s1 + $0x2c] sm:$0xf]
  %v71 = vld [vmem:[%s1 + $0x30] sm:$0xf]
  %v72 = vld [vmem:[%s1 + $0x34] sm:$0xf]
  %v73 = vld [vmem:[%s1 + $0x38] sm:$0xf]
  %v74 = vld [vmem:[%s1 + $0x3c] sm:$0xf]
  %v75 = vld [vmem:[%s1 + $0x40] sm:$0xf]
  %v76 = vld [vmem:[%s1 + $0x44] sm:$0xf]
  %v77 = vld [vmem:[%s1 + $0x48] sm:$0xf]
  %v78 = vld [vmem:[%s1 + $0x4c] sm:$0xf]
  %v79 = vld [vmem:[%s1 + $0x50] sm:$0xf]
  %v80 = vld [vmem:[%s1 + $0x54] sm:$0xf]
  %v81 = vld [vmem:[%s1 + $0x58] sm:$0xf]
  %v82 = vld [vmem:[%s1 + $0x5c] sm:$0xf]
  %v83 = vld [vmem:[%s1 + $0x60] sm:$0xf]
  %v84 = vld [vmem:[%s1 + $0x64] sm:$0xf]
  %v85 = vld [vmem:[%s1 + $0x68] sm:$0xf]
  %v86 = vld [vmem:[%s1 + $0x6c] sm:$0xf]
  %v87 = vld [vmem:[%s1 + $0x70] sm:$0xf]
  %v88 = vld [vmem:[%s1 + $0x74] sm:$0xf]
  %v89 = vld [vmem:[%s1 + $0x78] sm:$0xf]
  %v90 = vld [vmem:[%s1 + $0x7c] sm:$0xf]
  %v91 = vld [vmem:[%s1 + $0x80] sm:$0xf]
  %v92 = vld [vmem:[%s1 + $0x84] sm:$0xf]
  %v93 = vld [vmem:[%s1 + $0x88] sm:$0xf]
  %v94 = vld [vmem:[%s1 + $0x8c] sm:$0xf]
  %v95 = vld [vmem:[%s1 + $0x90] sm:$0xf]
  %v96 = vld [vmem:[%s1 + $0x94] sm:$0xf]
  %v97 = vld [vmem:[%s1 + $0x98] sm:$0xf]
  %v98 = vld [vmem:[%s1 + $0x9c] sm:$0xf]
  %v99 = vld [vmem:[%s1 + $0xa0] sm:$0xf]
  %v100 = vld [vmem:[%s1 + $0xa4] sm:$0xf]
  %v101 = vld [vmem:[%s1 + $0xa8] sm:$0xf]
  %v102 = vld [vmem:[%s1 + $0xac] sm:$0xf]
  %v103 = vld [vmem:[%s1 + $0xb0] sm:$0xf]
  %v104 = vld [vmem:[%s1 + $0xb4] sm:$0xf]
  %v105 = vld [vmem:[%s1 + $0xb8] sm:$0xf]
  %v106 = vld [vmem:[%s1 + $0xbc] sm:$0xf]
  %v107 = vld [vmem:[%s1 + $0xc0] sm:$0xf]
  %v108 = vld [vmem:[%s1 + $0xc4] sm:$0xf]
  %v109 = vld [vmem:[%s1 + $0xc8] sm:$0xf]
  %v110 = vld [vmem:[%s1 + $0xcc] sm:$0xf]
  %v111 = vld [vmem:[%s1 + $0xd0] sm:$0xf]
  %v112 = vld [vmem:[%s1 + $0xd4] sm:$0xf]
  %v113 = vld [vmem:[%s1 + $0xd8] sm:$0xf]
  %v114 = vld [vmem:[%s1 + $0xdc] sm:$0xf]
  %v115 = vld [vmem:[%s1 + $0xe0] sm:$0xf]
  %v116 = vld [vmem:[%s1 + $0xe4] sm:$0xf]
  %v117 = vld [vmem:[%s1 + $0xe8] sm:$0xf]
  %v118 = vld [vmem:[%s1 + $0xec] sm:$0xf]
  %v119 = vld [vmem:[%s1 + $0xf0] sm:$0xf]
  %v120 = vld [vmem:[%s1 + $0xf4] sm:$0xf]
  %v121 = vld [vmem:[%s1 + $0xf8] sm:$0xf]
  %v122 = vld [vmem:[%s1 + $0xfc] sm:$0xf]
  %v187 = vunpack.c.l.b16 %v59
  %v188 = vunpack.c.l.b16 %v60
  %v189 = vunpack.c.l.b16 %v61
  %v190 = vunpack.c.l.b16 %v62
  %v191 = vunpack.c.l.b16 %v63
  %v192 = vunpack.c.l.b16 %v64
  %v193 = vunpack.c.l.b16 %v65
  %v194 = vunpack.c.l.b16 %v66
  %v195 = vunpack.c.l.b16 %v67
  %v196 = vunpack.c.l.b16 %v68
  %v197 = vunpack.c.l.b16 %v69
  %v198 = vunpack.c.l.b16 %v70
  %v199 = vunpack.c.l.b16 %v71
  %v200 = vunpack.c.l.b16 %v72
  %v201 = vunpack.c.l.b16 %v73
  %v202 = vunpack.c.l.b16 %v74
  %v203 = vunpack.c.l.b16 %v75
  %v204 = vunpack.c.l.b16 %v76
  %v205 = vunpack.c.l.b16 %v77
  %v206 = vunpack.c.l.b16 %v78
  %v207 = vunpack.c.l.b16 %v79
  %v208 = vunpack.c.l.b16 %v80
  %v209 = vunpack.c.l.b16 %v81
  %v210 = vunpack.c.l.b16 %v82
  %v211 = vunpack.c.l.b16 %v83
  %v212 = vunpack.c.l.b16 %v84
  %v213 = vunpack.c.l.b16 %v85
  %v214 = vunpack.c.l.b16 %v86
  %v215 = vunpack.c.l.b16 %v87
  %v216 = vunpack.c.l.b16 %v88
  %v217 = vunpack.c.l.b16 %v89
  %v218 = vunpack.c.l.b16 %v90
  %v219 = vunpack.c.l.b16 %v91
  %v220 = vunpack.c.l.b16 %v92
  %v221 = vunpack.c.l.b16 %v93
  %v222 = vunpack.c.l.b16 %v94
  %v223 = vunpack.c.l.b16 %v95
  %v224 = vunpack.c.l.b16 %v96
  %v225 = vunpack.c.l.b16 %v97
  %v226 = vunpack.c.l.b16 %v98
  %v227 = vunpack.c.l.b16 %v99
  %v228 = vunpack.c.l.b16 %v100
  %v229 = vunpack.c.l.b16 %v101
  %v230 = vunpack.c.l.b16 %v102
  %v231 = vunpack.c.l.b16 %v103
  %v232 = vunpack.c.l.b16 %v104
  %v233 = vunpack.c.l.b16 %v105
  %v234 = vunpack.c.l.b16 %v106
  %v235 = vunpack.c.l.b16 %v107
  %v236 = vunpack.c.l.b16 %v108
  %v237 = vunpack.c.l.b16 %v109
  %v238 = vunpack.c.l.b16 %v110
  %v239 = vunpack.c.l.b16 %v111
  %v240 = vunpack.c.l.b16 %v112
  %v241 = vunpack.c.l.b16 %v113
  %v242 = vunpack.c.l.b16 %v114
  %v243 = vunpack.c.l.b16 %v115
  %v244 = vunpack.c.l.b16 %v116
  %v245 = vunpack.c.l.b16 %v117
  %v246 = vunpack.c.l.b16 %v118
  %v247 = vunpack.c.l.b16 %v119
  %v248 = vunpack.c.l.b16 %v120
  %v249 = vunpack.c.l.b16 %v121
  %v250 = vunpack.c.l.b16 %v122
  %v251 = vpack.c.b16 %v188, %v187
  %v252 = vpack.c.b16 %v190, %v189
  %v253 = vpack.c.b16 %v192, %v191
  %v254 = vpack.c.b16 %v194, %v193
  %v255 = vpack.c.b16 %v196, %v195
  %v256 = vpack.c.b16 %v198, %v197
  %v257 = vpack.c.b16 %v200, %v199
  %v258 = vpack.c.b16 %v202, %v201
  %v259 = vpack.c.b16 %v204, %v203
  %v260 = vpack.c.b16 %v206, %v205
  %v261 = vpack.c.b16 %v208, %v207
  %v262 = vpack.c.b16 %v210, %v209
  %v263 = vpack.c.b16 %v212, %v211
  %v264 = vpack.c.b16 %v214, %v213
  %v265 = vpack.c.b16 %v216, %v215
  %v266 = vpack.c.b16 %v218, %v217
  %v267 = vpack.c.b16 %v220, %v219
  %v268 = vpack.c.b16 %v222, %v221
  %v269 = vpack.c.b16 %v224, %v223
  %v270 = vpack.c.b16 %v226, %v225
  %v271 = vpack.c.b16 %v228, %v227
  %v272 = vpack.c.b16 %v230, %v229
  %v273 = vpack.c.b16 %v232, %v231
  %v274 = vpack.c.b16 %v234, %v233
  %v275 = vpack.c.b16 %v236, %v235
  %v276 = vpack.c.b16 %v238, %v237
  %v277 = vpack.c.b16 %v240, %v239
  %v278 = vpack.c.b16 %v242, %v241
  %v279 = vpack.c.b16 %v244, %v243
  %v280 = vpack.c.b16 %v246, %v245
  %v281 = vpack.c.b16 %v248, %v247
  %v282 = vpack.c.b16 %v250, %v249
  %vm283 = vcmask 392192
  %v285 = vsel %vm283, %v251, 0
  %v288 = vsel %vm283, %v252, 0
  %v291 = vsel %vm283, %v253, 0
  %v294 = vsel %vm283, %v254, 0
  %v297 = vsel %vm283, %v255, 0
  %v300 = vsel %vm283, %v256, 0
  %v303 = vsel %vm283, %v257, 0
  %v306 = vsel %vm283, %v258, 0
  %v309 = vsel %vm283, %v259, 0
  %v312 = vsel %vm283, %v260, 0
  %v315 = vsel %vm283, %v261, 0
  %v318 = vsel %vm283, %v262, 0
  %v321 = vsel %vm283, %v263, 0
  %v324 = vsel %vm283, %v264, 0
  %v327 = vsel %vm283, %v265, 0
  %v330 = vsel %vm283, %v266, 0
  %v333 = vsel %vm283, %v267, 0
  %v336 = vsel %vm283, %v268, 0
  %v339 = vsel %vm283, %v269, 0
  %v342 = vsel %vm283, %v270, 0
  %v345 = vsel %vm283, %v271, 0
  %v348 = vsel %vm283, %v272, 0
  %v351 = vsel %vm283, %v273, 0
  %v354 = vsel %vm283, %v274, 0
  %v357 = vsel %vm283, %v275, 0
  %v360 = vsel %vm283, %v276, 0
  %v363 = vsel %vm283, %v277, 0
  %v366 = vsel %vm283, %v278, 0
  %v369 = vsel %vm283, %v279, 0
  %v372 = vsel %vm283, %v280, 0
  %v375 = vsel %vm283, %v281, 0
  %v378 = vsel %vm283, %v282, 0
  %380 = vmatpush.bf16.msra.mxu0 0
  %381 = vmatpush.bf16.msra.mxu0 0
  %382 = vmatpush.bf16.msra.mxu0 0
  %383 = vmatpush.bf16.msra.mxu0 0
  %384 = vmatpush.bf16.msra.mxu0 0
  %385 = vmatpush.bf16.msra.mxu0 %v58
  %386 = vmatpush.bf16.msra.mxu0 %v57
  %387 = vmatpush.bf16.msra.mxu0 %v56
  %388 = vmatmul.bf16.gmra.mxu0 %v285
  %v389 = vpop.f32.mrf.mxu0
  %v390 = vadd.f32 0.0, %v389
  %v391 = vpop.f32.mrf.mxu0
  %v392 = vadd.f32 0.0, %v391
  %393 = vmatmul.bf16.gmra.mxu0 %v288
  %v394 = vpop.f32.mrf.mxu0
  %v395 = vadd.f32 0.0, %v394
  %v396 = vpop.f32.mrf.mxu0
  %v397 = vadd.f32 0.0, %v396
  %398 = vmatmul.bf16.gmra.mxu0 %v291
  %v399 = vpop.f32.mrf.mxu0
  %v400 = vadd.f32 0.0, %v399
  %v401 = vpop.f32.mrf.mxu0
  %v402 = vadd.f32 0.0, %v401
  %403 = vmatmul.bf16.gmra.mxu0 %v294
  %v404 = vpop.f32.mrf.mxu0
  %v405 = vadd.f32 0.0, %v404
  %v406 = vpop.f32.mrf.mxu0
  %v407 = vadd.f32 0.0, %v406
  %408 = vmatmul.bf16.gmra.mxu0 %v297
  %v409 = vpop.f32.mrf.mxu0
  %v410 = vadd.f32 0.0, %v409
  %v411 = vpop.f32.mrf.mxu0
  %v412 = vadd.f32 0.0, %v411
  %413 = vmatmul.bf16.gmra.mxu0 %v300
  %v414 = vpop.f32.mrf.mxu0
  %v415 = vadd.f32 0.0, %v414
  %v416 = vpop.f32.mrf.mxu0
  %v417 = vadd.f32 0.0, %v416
  %418 = vmatmul.bf16.gmra.mxu0 %v303
  %v419 = vpop.f32.mrf.mxu0
  %v420 = vadd.f32 0.0, %v419
  %v421 = vpop.f32.mrf.mxu0
  %v422 = vadd.f32 0.0, %v421
  %423 = vmatmul.bf16.gmra.mxu0 %v306
  %v424 = vpop.f32.mrf.mxu0
  %v425 = vadd.f32 0.0, %v424
  %v426 = vpop.f32.mrf.mxu0
  %v427 = vadd.f32 0.0, %v426
  %428 = vmatmul.bf16.gmra.mxu0 %v309
  %v429 = vpop.f32.mrf.mxu0
  %v430 = vadd.f32 0.0, %v429
  %v431 = vpop.f32.mrf.mxu0
  %v432 = vadd.f32 0.0, %v431
  %433 = vmatmul.bf16.gmra.mxu0 %v312
  %v434 = vpop.f32.mrf.mxu0
  %v435 = vadd.f32 0.0, %v434
  %v436 = vpop.f32.mrf.mxu0
  %v437 = vadd.f32 0.0, %v436
  %438 = vmatmul.bf16.gmra.mxu0 %v315
  %v439 = vpop.f32.mrf.mxu0
  %v440 = vadd.f32 0.0, %v439
  %v441 = vpop.f32.mrf.mxu0
  %v442 = vadd.f32 0.0, %v441
  %443 = vmatmul.bf16.gmra.mxu0 %v318
  %v444 = vpop.f32.mrf.mxu0
  %v445 = vadd.f32 0.0, %v444
  %v446 = vpop.f32.mrf.mxu0
  %v447 = vadd.f32 0.0, %v446
  %448 = vmatmul.bf16.gmra.mxu0 %v321
  %v449 = vpop.f32.mrf.mxu0
  %v450 = vadd.f32 0.0, %v449
  %v451 = vpop.f32.mrf.mxu0
  %v452 = vadd.f32 0.0, %v451
  %453 = vmatmul.bf16.gmra.mxu0 %v324
  %v454 = vpop.f32.mrf.mxu0
  %v455 = vadd.f32 0.0, %v454
  %v456 = vpop.f32.mrf.mxu0
  %v457 = vadd.f32 0.0, %v456
  %458 = vmatmul.bf16.gmra.mxu0 %v327
  %v459 = vpop.f32.mrf.mxu0
  %v460 = vadd.f32 0.0, %v459
  %v461 = vpop.f32.mrf.mxu0
  %v462 = vadd.f32 0.0, %v461
  %463 = vmatmul.bf16.gmra.mxu0 %v330
  %v464 = vpop.f32.mrf.mxu0
  %v465 = vadd.f32 0.0, %v464
  %v466 = vpop.f32.mrf.mxu0
  %v467 = vadd.f32 0.0, %v466
  %468 = vmatmul.bf16.gmra.mxu0 %v333
  %v469 = vpop.f32.mrf.mxu0
  %v470 = vadd.f32 0.0, %v469
  %v471 = vpop.f32.mrf.mxu0
  %v472 = vadd.f32 0.0, %v471
  %473 = vmatmul.bf16.gmra.mxu0 %v336
  %v474 = vpop.f32.mrf.mxu0
  %v475 = vadd.f32 0.0, %v474
  %v476 = vpop.f32.mrf.mxu0
  %v477 = vadd.f32 0.0, %v476
  %478 = vmatmul.bf16.gmra.mxu0 %v339
  %v479 = vpop.f32.mrf.mxu0
  %v480 = vadd.f32 0.0, %v479
  %v481 = vpop.f32.mrf.mxu0
  %v482 = vadd.f32 0.0, %v481
  %483 = vmatmul.bf16.gmra.mxu0 %v342
  %v484 = vpop.f32.mrf.mxu0
  %v485 = vadd.f32 0.0, %v484
  %v486 = vpop.f32.mrf.mxu0
  %v487 = vadd.f32 0.0, %v486
  %488 = vmatmul.bf16.gmra.mxu0 %v345
  %v489 = vpop.f32.mrf.mxu0
  %v490 = vadd.f32 0.0, %v489
  %v491 = vpop.f32.mrf.mxu0
  %v492 = vadd.f32 0.0, %v491
  %493 = vmatmul.bf16.gmra.mxu0 %v348
  %v494 = vpop.f32.mrf.mxu0
  %v495 = vadd.f32 0.0, %v494
  %v496 = vpop.f32.mrf.mxu0
  %v497 = vadd.f32 0.0, %v496
  %498 = vmatmul.bf16.gmra.mxu0 %v351
  %v499 = vpop.f32.mrf.mxu0
  %v500 = vadd.f32 0.0, %v499
  %v501 = vpop.f32.mrf.mxu0
  %v502 = vadd.f32 0.0, %v501
  %503 = vmatmul.bf16.gmra.mxu0 %v354
  %v504 = vpop.f32.mrf.mxu0
  %v505 = vadd.f32 0.0, %v504
  %v506 = vpop.f32.mrf.mxu0
  %v507 = vadd.f32 0.0, %v506
  %508 = vmatmul.bf16.gmra.mxu0 %v357
  %v509 = vpop.f32.mrf.mxu0
  %v510 = vadd.f32 0.0, %v509
  %v511 = vpop.f32.mrf.mxu0
  %v512 = vadd.f32 0.0, %v511
  %513 = vmatmul.bf16.gmra.mxu0 %v360
  %v514 = vpop.f32.mrf.mxu0
  %v515 = vadd.f32 0.0, %v514
  %v516 = vpop.f32.mrf.mxu0
  %v517 = vadd.f32 0.0, %v516
  %518 = vmatmul.bf16.gmra.mxu0 %v363
  %v519 = vpop.f32.mrf.mxu0
  %v520 = vadd.f32 0.0, %v519
  %v521 = vpop.f32.mrf.mxu0
  %v522 = vadd.f32 0.0, %v521
  %523 = vmatmul.bf16.gmra.mxu0 %v366
  %v524 = vpop.f32.mrf.mxu0
  %v525 = vadd.f32 0.0, %v524
  %v526 = vpop.f32.mrf.mxu0
  %v527 = vadd.f32 0.0, %v526
  %528 = vmatmul.bf16.gmra.mxu0 %v369
  %v529 = vpop.f32.mrf.mxu0
  %v530 = vadd.f32 0.0, %v529
  %v531 = vpop.f32.mrf.mxu0
  %v532 = vadd.f32 0.0, %v531
  %533 = vmatmul.bf16.gmra.mxu0 %v372
  %v534 = vpop.f32.mrf.mxu0
  %v535 = vadd.f32 0.0, %v534
  %v536 = vpop.f32.mrf.mxu0
  %v537 = vadd.f32 0.0, %v536
  %538 = vmatmul.bf16.gmra.mxu0 %v375
  %v539 = vpop.f32.mrf.mxu0
  %v540 = vadd.f32 0.0, %v539
  %v541 = vpop.f32.mrf.mxu0
  %v542 = vadd.f32 0.0, %v541
  %543 = vmatmul.bf16.gmra.mxu0 %v378
  %v544 = vpop.f32.mrf.mxu0
  %v545 = vadd.f32 0.0, %v544
  %v546 = vpop.f32.mrf.mxu0
  %v547 = vadd.f32 0.0, %v546
  %548 = vdwg.mxu0
  %v549 = vmax.f32 %v390, 0.0
  %v550 = vmax.f32 %v392, 0.0
  %v551 = vmax.f32 %v395, 0.0
  %v552 = vmax.f32 %v397, 0.0
  %v553 = vmax.f32 %v400, 0.0
  %v554 = vmax.f32 %v402, 0.0
  %v555 = vmax.f32 %v405, 0.0
  %v556 = vmax.f32 %v407, 0.0
  %v557 = vmax.f32 %v410, 0.0
  %v558 = vmax.f32 %v412, 0.0
  %v559 = vmax.f32 %v415, 0.0
  %v560 = vmax.f32 %v417, 0.0
  %v561 = vmax.f32 %v420, 0.0
  %v562 = vmax.f32 %v422, 0.0
  %v563 = vmax.f32 %v425, 0.0
  %v564 = vmax.f32 %v427, 0.0
  %v565 = vmax.f32 %v430, 0.0
  %v566 = vmax.f32 %v432, 0.0
  %v567 = vmax.f32 %v435, 0.0
  %v568 = vmax.f32 %v437, 0.0
  %v569 = vmax.f32 %v440, 0.0
  %v570 = vmax.f32 %v442, 0.0
  %v571 = vmax.f32 %v445, 0.0
  %v572 = vmax.f32 %v447, 0.0
  %v573 = vmax.f32 %v450, 0.0
  %v574 = vmax.f32 %v452, 0.0
  %v575 = vmax.f32 %v455, 0.0
  %v576 = vmax.f32 %v457, 0.0
  %v577 = vmax.f32 %v460, 0.0
  %v578 = vmax.f32 %v462, 0.0
  %v579 = vmax.f32 %v465, 0.0
  %v580 = vmax.f32 %v467, 0.0
  %v581 = vmax.f32 %v470, 0.0
  %v582 = vmax.f32 %v472, 0.0
  %v583 = vmax.f32 %v475, 0.0
  %v584 = vmax.f32 %v477, 0.0
  %v585 = vmax.f32 %v480, 0.0
  %v586 = vmax.f32 %v482, 0.0
  %v587 = vmax.f32 %v485, 0.0
  %v588 = vmax.f32 %v487, 0.0
  %v589 = vmax.f32 %v490, 0.0
  %v590 = vmax.f32 %v492, 0.0
  %v591 = vmax.f32 %v495, 0.0
  %v592 = vmax.f32 %v497, 0.0
  %v593 = vmax.f32 %v500, 0.0
  %v594 = vmax.f32 %v502, 0.0
  %v595 = vmax.f32 %v505, 0.0
  %v596 = vmax.f32 %v507, 0.0
  %v597 = vmax.f32 %v510, 0.0
  %v598 = vmax.f32 %v512, 0.0
  %v599 = vmax.f32 %v515, 0.0
  %v600 = vmax.f32 %v517, 0.0
  %v601 = vmax.f32 %v520, 0.0
  %v602 = vmax.f32 %v522, 0.0
  %v603 = vmax.f32 %v525, 0.0
  %v604 = vmax.f32 %v527, 0.0
  %v605 = vmax.f32 %v530, 0.0
  %v606 = vmax.f32 %v532, 0.0
  %v607 = vmax.f32 %v535, 0.0
  %v608 = vmax.f32 %v537, 0.0
  %v609 = vmax.f32 %v540, 0.0
  %v610 = vmax.f32 %v542, 0.0
  %v611 = vmax.f32 %v545, 0.0
  %v612 = vmax.f32 %v547, 0.0
  %v613 = vpack.c.bf16 %v550, %v549
  %v614 = vpack.c.bf16 %v552, %v551
  %v615 = vpack.c.bf16 %v554, %v553
  %v616 = vpack.c.bf16 %v556, %v555
  %v617 = vpack.c.bf16 %v558, %v557
  %v618 = vpack.c.bf16 %v560, %v559
  %v619 = vpack.c.bf16 %v562, %v561
  %v620 = vpack.c.bf16 %v564, %v563
  %v621 = vpack.c.bf16 %v566, %v565
  %v622 = vpack.c.bf16 %v568, %v567
  %v623 = vpack.c.bf16 %v570, %v569
  %v624 = vpack.c.bf16 %v572, %v571
  %v625 = vpack.c.bf16 %v574, %v573
  %v626 = vpack.c.bf16 %v576, %v575
  %v627 = vpack.c.bf16 %v578, %v577
  %v628 = vpack.c.bf16 %v580, %v579
  %v629 = vpack.c.bf16 %v582, %v581
  %v630 = vpack.c.bf16 %v584, %v583
  %v631 = vpack.c.bf16 %v586, %v585
  %v632 = vpack.c.bf16 %v588, %v587
  %v633 = vpack.c.bf16 %v590, %v589
  %v634 = vpack.c.bf16 %v592, %v591
  %v635 = vpack.c.bf16 %v594, %v593
  %v636 = vpack.c.bf16 %v596, %v595
  %v637 = vpack.c.bf16 %v598, %v597
  %v638 = vpack.c.bf16 %v600, %v599
  %v639 = vpack.c.bf16 %v602, %v601
  %v640 = vpack.c.bf16 %v604, %v603
  %v641 = vpack.c.bf16 %v606, %v605
  %v642 = vpack.c.bf16 %v608, %v607
  %v643 = vpack.c.bf16 %v610, %v609
  %v644 = vpack.c.bf16 %v612, %v611
  %v645 = vld [vmem:[%s2] sm:$0xff]
  %v646 = vld [vmem:[%s2 + $0x8] sm:$0xff]
  %v647 = vld [vmem:[%s1 + $0x100] sm:$0xf]
  %v648 = vld [vmem:[%s1 + $0x104] sm:$0xf]
  %v649 = vld [vmem:[%s1 + $0x108] sm:$0xf]
  %v650 = vld [vmem:[%s1 + $0x10c] sm:$0xf]
  %v651 = vld [vmem:[%s1 + $0x110] sm:$0xf]
  %v652 = vld [vmem:[%s1 + $0x114] sm:$0xf]
  %v653 = vld [vmem:[%s1 + $0x118] sm:$0xf]
  %v654 = vld [vmem:[%s1 + $0x11c] sm:$0xf]
  %v655 = vld [vmem:[%s1 + $0x120] sm:$0xf]
  %v656 = vld [vmem:[%s1 + $0x124] sm:$0xf]
  %v657 = vld [vmem:[%s1 + $0x128] sm:$0xf]
  %v658 = vld [vmem:[%s1 + $0x12c] sm:$0xf]
  %v659 = vld [vmem:[%s1 + $0x130] sm:$0xf]
  %v660 = vld [vmem:[%s1 + $0x134] sm:$0xf]
  %v661 = vld [vmem:[%s1 + $0x138] sm:$0xf]
  %v662 = vld [vmem:[%s1 + $0x13c] sm:$0xf]
  %v663 = vld [vmem:[%s1 + $0x140] sm:$0xf]
  %v664 = vld [vmem:[%s1 + $0x144] sm:$0xf]
  %v665 = vld [vmem:[%s1 + $0x148] sm:$0xf]
  %v666 = vld [vmem:[%s1 + $0x14c] sm:$0xf]
  %v667 = vld [vmem:[%s1 + $0x150] sm:$0xf]
  %v668 = vld [vmem:[%s1 + $0x154] sm:$0xf]
  %v669 = vld [vmem:[%s1 + $0x158] sm:$0xf]
  %v670 = vld [vmem:[%s1 + $0x15c] sm:$0xf]
  %v671 = vld [vmem:[%s1 + $0x160] sm:$0xf]
  %v672 = vld [vmem:[%s1 + $0x164] sm:$0xf]
  %v673 = vld [vmem:[%s1 + $0x168] sm:$0xf]
  %v674 = vld [vmem:[%s1 + $0x16c] sm:$0xf]
  %v675 = vld [vmem:[%s1 + $0x170] sm:$0xf]
  %v676 = vld [vmem:[%s1 + $0x174] sm:$0xf]
  %v677 = vld [vmem:[%s1 + $0x178] sm:$0xf]
  %v678 = vld [vmem:[%s1 + $0x17c] sm:$0xf]
  %v679 = vld [vmem:[%s1 + $0x180] sm:$0xf]
  %v680 = vld [vmem:[%s1 + $0x184] sm:$0xf]
  %v681 = vld [vmem:[%s1 + $0x188] sm:$0xf]
  %v682 = vld [vmem:[%s1 + $0x18c] sm:$0xf]
  %v683 = vld [vmem:[%s1 + $0x190] sm:$0xf]
  %v684 = vld [vmem:[%s1 + $0x194] sm:$0xf]
  %v685 = vld [vmem:[%s1 + $0x198] sm:$0xf]
  %v686 = vld [vmem:[%s1 + $0x19c] sm:$0xf]
  %v687 = vld [vmem:[%s1 + $0x1a0] sm:$0xf]
  %v688 = vld [vmem:[%s1 + $0x1a4] sm:$0xf]
  %v689 = vld [vmem:[%s1 + $0x1a8] sm:$0xf]
  %v690 = vld [vmem:[%s1 + $0x1ac] sm:$0xf]
  %v691 = vld [vmem:[%s1 + $0x1b0] sm:$0xf]
  %v692 = vld [vmem:[%s1 + $0x1b4] sm:$0xf]
  %v693 = vld [vmem:[%s1 + $0x1b8] sm:$0xf]
  %v694 = vld [vmem:[%s1 + $0x1bc] sm:$0xf]
  %v695 = vld [vmem:[%s1 + $0x1c0] sm:$0xf]
  %v696 = vld [vmem:[%s1 + $0x1c4] sm:$0xf]
  %v697 = vld [vmem:[%s1 + $0x1c8] sm:$0xf]
  %v698 = vld [vmem:[%s1 + $0x1cc] sm:$0xf]
  %v699 = vld [vmem:[%s1 + $0x1d0] sm:$0xf]
  %v700 = vld [vmem:[%s1 + $0x1d4] sm:$0xf]
  %v701 = vld [vmem:[%s1 + $0x1d8] sm:$0xf]
  %v702 = vld [vmem:[%s1 + $0x1dc] sm:$0xf]
  %v703 = vld [vmem:[%s1 + $0x1e0] sm:$0xf]
  %v704 = vld [vmem:[%s1 + $0x1e4] sm:$0xf]
  %v705 = vld [vmem:[%s1 + $0x1e8] sm:$0xf]
  %v706 = vld [vmem:[%s1 + $0x1ec] sm:$0xf]
  %v707 = vld [vmem:[%s1 + $0x1f0] sm:$0xf]
  %v708 = vld [vmem:[%s1 + $0x1f4] sm:$0xf]
  %v709 = vld [vmem:[%s1 + $0x1f8] sm:$0xf]
  %v710 = vld [vmem:[%s1 + $0x1fc] sm:$0xf]
  %v775 = vunpack.c.l.b16 %v647
  %v776 = vunpack.c.l.b16 %v648
  %v777 = vunpack.c.l.b16 %v649
  %v778 = vunpack.c.l.b16 %v650
  %v779 = vunpack.c.l.b16 %v651
  %v780 = vunpack.c.l.b16 %v652
  %v781 = vunpack.c.l.b16 %v653
  %v782 = vunpack.c.l.b16 %v654
  %v783 = vunpack.c.l.b16 %v655
  %v784 = vunpack.c.l.b16 %v656
  %v785 = vunpack.c.l.b16 %v657
  %v786 = vunpack.c.l.b16 %v658
  %v787 = vunpack.c.l.b16 %v659
  %v788 = vunpack.c.l.b16 %v660
  %v789 = vunpack.c.l.b16 %v661
  %v790 = vunpack.c.l.b16 %v662
  %v791 = vunpack.c.l.b16 %v663
  %v792 = vunpack.c.l.b16 %v664
  %v793 = vunpack.c.l.b16 %v665
  %v794 = vunpack.c.l.b16 %v666
  %v795 = vunpack.c.l.b16 %v667
  %v796 = vunpack.c.l.b16 %v668
  %v797 = vunpack.c.l.b16 %v669
  %v798 = vunpack.c.l.b16 %v670
  %v799 = vunpack.c.l.b16 %v671
  %v800 = vunpack.c.l.b16 %v672
  %v801 = vunpack.c.l.b16 %v673
  %v802 = vunpack.c.l.b16 %v674
  %v803 = vunpack.c.l.b16 %v675
  %v804 = vunpack.c.l.b16 %v676
  %v805 = vunpack.c.l.b16 %v677
  %v806 = vunpack.c.l.b16 %v678
  %v807 = vunpack.c.l.b16 %v679
  %v808 = vunpack.c.l.b16 %v680
  %v809 = vunpack.c.l.b16 %v681
  %v810 = vunpack.c.l.b16 %v682
  %v811 = vunpack.c.l.b16 %v683
  %v812 = vunpack.c.l.b16 %v684
  %v813 = vunpack.c.l.b16 %v685
  %v814 = vunpack.c.l.b16 %v686
  %v815 = vunpack.c.l.b16 %v687
  %v816 = vunpack.c.l.b16 %v688
  %v817 = vunpack.c.l.b16 %v689
  %v818 = vunpack.c.l.b16 %v690
  %v819 = vunpack.c.l.b16 %v691
  %v820 = vunpack.c.l.b16 %v692
  %v821 = vunpack.c.l.b16 %v693
  %v822 = vunpack.c.l.b16 %v694
  %v823 = vunpack.c.l.b16 %v695
  %v824 = vunpack.c.l.b16 %v696
  %v825 = vunpack.c.l.b16 %v697
  %v826 = vunpack.c.l.b16 %v698
  %v827 = vunpack.c.l.b16 %v699
  %v828 = vunpack.c.l.b16 %v700
  %v829 = vunpack.c.l.b16 %v701
  %v830 = vunpack.c.l.b16 %v702
  %v831 = vunpack.c.l.b16 %v703
  %v832 = vunpack.c.l.b16 %v704
  %v833 = vunpack.c.l.b16 %v705
  %v834 = vunpack.c.l.b16 %v706
  %v835 = vunpack.c.l.b16 %v707
  %v836 = vunpack.c.l.b16 %v708
  %v837 = vunpack.c.l.b16 %v709
  %v838 = vunpack.c.l.b16 %v710
  %v839 = vpack.c.b16 %v776, %v775
  %v840 = vpack.c.b16 %v778, %v777
  %v841 = vpack.c.b16 %v780, %v779
  %v842 = vpack.c.b16 %v782, %v781
  %v843 = vpack.c.b16 %v784, %v783
  %v844 = vpack.c.b16 %v786, %v785
  %v845 = vpack.c.b16 %v788, %v787
  %v846 = vpack.c.b16 %v790, %v789
  %v847 = vpack.c.b16 %v792, %v791
  %v848 = vpack.c.b16 %v794, %v793
  %v849 = vpack.c.b16 %v796, %v795
  %v850 = vpack.c.b16 %v798, %v797
  %v851 = vpack.c.b16 %v800, %v799
  %v852 = vpack.c.b16 %v802, %v801
  %v853 = vpack.c.b16 %v804, %v803
  %v854 = vpack.c.b16 %v806, %v805
  %v855 = vpack.c.b16 %v808, %v807
  %v856 = vpack.c.b16 %v810, %v809
  %v857 = vpack.c.b16 %v812, %v811
  %v858 = vpack.c.b16 %v814, %v813
  %v859 = vpack.c.b16 %v816, %v815
  %v860 = vpack.c.b16 %v818, %v817
  %v861 = vpack.c.b16 %v820, %v819
  %v862 = vpack.c.b16 %v822, %v821
  %v863 = vpack.c.b16 %v824, %v823
  %v864 = vpack.c.b16 %v826, %v825
  %v865 = vpack.c.b16 %v828, %v827
  %v866 = vpack.c.b16 %v830, %v829
  %v867 = vpack.c.b16 %v832, %v831
  %v868 = vpack.c.b16 %v834, %v833
  %v869 = vpack.c.b16 %v836, %v835
  %v870 = vpack.c.b16 %v838, %v837
  %v872 = vsel %vm283, %v839, 0
  %v875 = vsel %vm283, %v840, 0
  %v878 = vsel %vm283, %v841, 0
  %v881 = vsel %vm283, %v842, 0
  %v884 = vsel %vm283, %v843, 0
  %v887 = vsel %vm283, %v844, 0
  %v890 = vsel %vm283, %v845, 0
  %v893 = vsel %vm283, %v846, 0
  %v896 = vsel %vm283, %v847, 0
  %v899 = vsel %vm283, %v848, 0
  %v902 = vsel %vm283, %v849, 0
  %v905 = vsel %vm283, %v850, 0
  %v908 = vsel %vm283, %v851, 0
  %v911 = vsel %vm283, %v852, 0
  %v914 = vsel %vm283, %v853, 0
  %v917 = vsel %vm283, %v854, 0
  %v920 = vsel %vm283, %v855, 0
  %v923 = vsel %vm283, %v856, 0
  %v926 = vsel %vm283, %v857, 0
  %v929 = vsel %vm283, %v858, 0
  %v932 = vsel %vm283, %v859, 0
  %v935 = vsel %vm283, %v860, 0
  %v938 = vsel %vm283, %v861, 0
  %v941 = vsel %vm283, %v862, 0
  %v944 = vsel %vm283, %v863, 0
  %v947 = vsel %vm283, %v864, 0
  %v950 = vsel %vm283, %v865, 0
  %v953 = vsel %vm283, %v866, 0
  %v956 = vsel %vm283, %v867, 0
  %v959 = vsel %vm283, %v868, 0
  %v962 = vsel %vm283, %v869, 0
  %v965 = vsel %vm283, %v870, 0
  %967 = vmatpush.bf16.msra.mxu0 0
  %968 = vmatpush.bf16.msra.mxu0 0
  %969 = vmatpush.bf16.msra.mxu0 0
  %970 = vmatpush.bf16.msra.mxu0 0
  %971 = vmatpush.bf16.msra.mxu0 0
  %972 = vmatpush.bf16.msra.mxu0 %v58
  %973 = vmatpush.bf16.msra.mxu0 %v57
  %974 = vmatpush.bf16.msra.mxu0 %v56
  %975 = vmatmul.bf16.gmra.mxu0 %v872
  %v976 = vpop.f32.mrf.mxu0
  %v977 = vadd.f32 0.0, %v976
  %v978 = vpop.f32.mrf.mxu0
  %v979 = vadd.f32 0.0, %v978
  %980 = vmatmul.bf16.gmra.mxu0 %v875
  %v981 = vpop.f32.mrf.mxu0
  %v982 = vadd.f32 0.0, %v981
  %v983 = vpop.f32.mrf.mxu0
  %v984 = vadd.f32 0.0, %v983
  %985 = vmatmul.bf16.gmra.mxu0 %v878
  %v986 = vpop.f32.mrf.mxu0
  %v987 = vadd.f32 0.0, %v986
  %v988 = vpop.f32.mrf.mxu0
  %v989 = vadd.f32 0.0, %v988
  %990 = vmatmul.bf16.gmra.mxu0 %v881
  %v991 = vpop.f32.mrf.mxu0
  %v992 = vadd.f32 0.0, %v991
  %v993 = vpop.f32.mrf.mxu0
  %v994 = vadd.f32 0.0, %v993
  %995 = vmatmul.bf16.gmra.mxu0 %v884
  %v996 = vpop.f32.mrf.mxu0
  %v997 = vadd.f32 0.0, %v996
  %v998 = vpop.f32.mrf.mxu0
  %v999 = vadd.f32 0.0, %v998
  %1000 = vmatmul.bf16.gmra.mxu0 %v887
  %v1001 = vpop.f32.mrf.mxu0
  %v1002 = vadd.f32 0.0, %v1001
  %v1003 = vpop.f32.mrf.mxu0
  %v1004 = vadd.f32 0.0, %v1003
  %1005 = vmatmul.bf16.gmra.mxu0 %v890
  %v1006 = vpop.f32.mrf.mxu0
  %v1007 = vadd.f32 0.0, %v1006
  %v1008 = vpop.f32.mrf.mxu0
  %v1009 = vadd.f32 0.0, %v1008
  %1010 = vmatmul.bf16.gmra.mxu0 %v893
  %v1011 = vpop.f32.mrf.mxu0
  %v1012 = vadd.f32 0.0, %v1011
  %v1013 = vpop.f32.mrf.mxu0
  %v1014 = vadd.f32 0.0, %v1013
  %1015 = vmatmul.bf16.gmra.mxu0 %v896
  %v1016 = vpop.f32.mrf.mxu0
  %v1017 = vadd.f32 0.0, %v1016
  %v1018 = vpop.f32.mrf.mxu0
  %v1019 = vadd.f32 0.0, %v1018
  %1020 = vmatmul.bf16.gmra.mxu0 %v899
  %v1021 = vpop.f32.mrf.mxu0
  %v1022 = vadd.f32 0.0, %v1021
  %v1023 = vpop.f32.mrf.mxu0
  %v1024 = vadd.f32 0.0, %v1023
  %1025 = vmatmul.bf16.gmra.mxu0 %v902
  %v1026 = vpop.f32.mrf.mxu0
  %v1027 = vadd.f32 0.0, %v1026
  %v1028 = vpop.f32.mrf.mxu0
  %v1029 = vadd.f32 0.0, %v1028
  %1030 = vmatmul.bf16.gmra.mxu0 %v905
  %v1031 = vpop.f32.mrf.mxu0
  %v1032 = vadd.f32 0.0, %v1031
  %v1033 = vpop.f32.mrf.mxu0
  %v1034 = vadd.f32 0.0, %v1033
  %1035 = vmatmul.bf16.gmra.mxu0 %v908
  %v1036 = vpop.f32.mrf.mxu0
  %v1037 = vadd.f32 0.0, %v1036
  %v1038 = vpop.f32.mrf.mxu0
  %v1039 = vadd.f32 0.0, %v1038
  %1040 = vmatmul.bf16.gmra.mxu0 %v911
  %v1041 = vpop.f32.mrf.mxu0
  %v1042 = vadd.f32 0.0, %v1041
  %v1043 = vpop.f32.mrf.mxu0
  %v1044 = vadd.f32 0.0, %v1043
  %1045 = vmatmul.bf16.gmra.mxu0 %v914
  %v1046 = vpop.f32.mrf.mxu0
  %v1047 = vadd.f32 0.0, %v1046
  %v1048 = vpop.f32.mrf.mxu0
  %v1049 = vadd.f32 0.0, %v1048
  %1050 = vmatmul.bf16.gmra.mxu0 %v917
  %v1051 = vpop.f32.mrf.mxu0
  %v1052 = vadd.f32 0.0, %v1051
  %v1053 = vpop.f32.mrf.mxu0
  %v1054 = vadd.f32 0.0, %v1053
  %1055 = vmatmul.bf16.gmra.mxu0 %v920
  %v1056 = vpop.f32.mrf.mxu0
  %v1057 = vadd.f32 0.0, %v1056
  %v1058 = vpop.f32.mrf.mxu0
  %v1059 = vadd.f32 0.0, %v1058
  %1060 = vmatmul.bf16.gmra.mxu0 %v923
  %v1061 = vpop.f32.mrf.mxu0
  %v1062 = vadd.f32 0.0, %v1061
  %v1063 = vpop.f32.mrf.mxu0
  %v1064 = vadd.f32 0.0, %v1063
  %1065 = vmatmul.bf16.gmra.mxu0 %v926
  %v1066 = vpop.f32.mrf.mxu0
  %v1067 = vadd.f32 0.0, %v1066
  %v1068 = vpop.f32.mrf.mxu0
  %v1069 = vadd.f32 0.0, %v1068
  %1070 = vmatmul.bf16.gmra.mxu0 %v929
  %v1071 = vpop.f32.mrf.mxu0
  %v1072 = vadd.f32 0.0, %v1071
  %v1073 = vpop.f32.mrf.mxu0
  %v1074 = vadd.f32 0.0, %v1073
  %1075 = vmatmul.bf16.gmra.mxu0 %v932
  %v1076 = vpop.f32.mrf.mxu0
  %v1077 = vadd.f32 0.0, %v1076
  %v1078 = vpop.f32.mrf.mxu0
  %v1079 = vadd.f32 0.0, %v1078
  %1080 = vmatmul.bf16.gmra.mxu0 %v935
  %v1081 = vpop.f32.mrf.mxu0
  %v1082 = vadd.f32 0.0, %v1081
  %v1083 = vpop.f32.mrf.mxu0
  %v1084 = vadd.f32 0.0, %v1083
  %1085 = vmatmul.bf16.gmra.mxu0 %v938
  %v1086 = vpop.f32.mrf.mxu0
  %v1087 = vadd.f32 0.0, %v1086
  %v1088 = vpop.f32.mrf.mxu0
  %v1089 = vadd.f32 0.0, %v1088
  %1090 = vmatmul.bf16.gmra.mxu0 %v941
  %v1091 = vpop.f32.mrf.mxu0
  %v1092 = vadd.f32 0.0, %v1091
  %v1093 = vpop.f32.mrf.mxu0
  %v1094 = vadd.f32 0.0, %v1093
  %1095 = vmatmul.bf16.gmra.mxu0 %v944
  %v1096 = vpop.f32.mrf.mxu0
  %v1097 = vadd.f32 0.0, %v1096
  %v1098 = vpop.f32.mrf.mxu0
  %v1099 = vadd.f32 0.0, %v1098
  %1100 = vmatmul.bf16.gmra.mxu0 %v947
  %v1101 = vpop.f32.mrf.mxu0
  %v1102 = vadd.f32 0.0, %v1101
  %v1103 = vpop.f32.mrf.mxu0
  %v1104 = vadd.f32 0.0, %v1103
  %1105 = vmatmul.bf16.gmra.mxu0 %v950
  %v1106 = vpop.f32.mrf.mxu0
  %v1107 = vadd.f32 0.0, %v1106
  %v1108 = vpop.f32.mrf.mxu0
  %v1109 = vadd.f32 0.0, %v1108
  %1110 = vmatmul.bf16.gmra.mxu0 %v953
  %v1111 = vpop.f32.mrf.mxu0
  %v1112 = vadd.f32 0.0, %v1111
  %v1113 = vpop.f32.mrf.mxu0
  %v1114 = vadd.f32 0.0, %v1113
  %1115 = vmatmul.bf16.gmra.mxu0 %v956
  %v1116 = vpop.f32.mrf.mxu0
  %v1117 = vadd.f32 0.0, %v1116
  %v1118 = vpop.f32.mrf.mxu0
  %v1119 = vadd.f32 0.0, %v1118
  %1120 = vmatmul.bf16.gmra.mxu0 %v959
  %v1121 = vpop.f32.mrf.mxu0
  %v1122 = vadd.f32 0.0, %v1121
  %v1123 = vpop.f32.mrf.mxu0
  %v1124 = vadd.f32 0.0, %v1123
  %1125 = vmatmul.bf16.gmra.mxu0 %v962
  %v1126 = vpop.f32.mrf.mxu0
  %v1127 = vadd.f32 0.0, %v1126
  %v1128 = vpop.f32.mrf.mxu0
  %v1129 = vadd.f32 0.0, %v1128
  %1130 = vmatmul.bf16.gmra.mxu0 %v965
  %v1131 = vpop.f32.mrf.mxu0
  %v1132 = vadd.f32 0.0, %v1131
  %v1133 = vpop.f32.mrf.mxu0
  %v1134 = vadd.f32 0.0, %v1133
  %1135 = vdwg.mxu0
  %v1136 = vmax.f32 %v977, 0.0
  %v1137 = vmax.f32 %v979, 0.0
  %v1138 = vmax.f32 %v982, 0.0
  %v1139 = vmax.f32 %v984, 0.0
  %v1140 = vmax.f32 %v987, 0.0
  %v1141 = vmax.f32 %v989, 0.0
  %v1142 = vmax.f32 %v992, 0.0
  %v1143 = vmax.f32 %v994, 0.0
  %v1144 = vmax.f32 %v997, 0.0
  %v1145 = vmax.f32 %v999, 0.0
  %v1146 = vmax.f32 %v1002, 0.0
  %v1147 = vmax.f32 %v1004, 0.0
  %v1148 = vmax.f32 %v1007, 0.0
  %v1149 = vmax.f32 %v1009, 0.0
  %v1150 = vmax.f32 %v1012, 0.0
  %v1151 = vmax.f32 %v1014, 0.0
  %v1152 = vmax.f32 %v1017, 0.0
  %v1153 = vmax.f32 %v1019, 0.0
  %v1154 = vmax.f32 %v1022, 0.0
  %v1155 = vmax.f32 %v1024, 0.0
  %v1156 = vmax.f32 %v1027, 0.0
  %v1157 = vmax.f32 %v1029, 0.0
  %v1158 = vmax.f32 %v1032, 0.0
  %v1159 = vmax.f32 %v1034, 0.0
  %v1160 = vmax.f32 %v1037, 0.0
  %v1161 = vmax.f32 %v1039, 0.0
  %v1162 = vmax.f32 %v1042, 0.0
  %v1163 = vmax.f32 %v1044, 0.0
  %v1164 = vmax.f32 %v1047, 0.0
  %v1165 = vmax.f32 %v1049, 0.0
  %v1166 = vmax.f32 %v1052, 0.0
  %v1167 = vmax.f32 %v1054, 0.0
  %v1168 = vmax.f32 %v1057, 0.0
  %v1169 = vmax.f32 %v1059, 0.0
  %v1170 = vmax.f32 %v1062, 0.0
  %v1171 = vmax.f32 %v1064, 0.0
  %v1172 = vmax.f32 %v1067, 0.0
  %v1173 = vmax.f32 %v1069, 0.0
  %v1174 = vmax.f32 %v1072, 0.0
  %v1175 = vmax.f32 %v1074, 0.0
  %v1176 = vmax.f32 %v1077, 0.0
  %v1177 = vmax.f32 %v1079, 0.0
  %v1178 = vmax.f32 %v1082, 0.0
  %v1179 = vmax.f32 %v1084, 0.0
  %v1180 = vmax.f32 %v1087, 0.0
  %v1181 = vmax.f32 %v1089, 0.0
  %v1182 = vmax.f32 %v1092, 0.0
  %v1183 = vmax.f32 %v1094, 0.0
  %v1184 = vmax.f32 %v1097, 0.0
  %v1185 = vmax.f32 %v1099, 0.0
  %v1186 = vmax.f32 %v1102, 0.0
  %v1187 = vmax.f32 %v1104, 0.0
  %v1188 = vmax.f32 %v1107, 0.0
  %v1189 = vmax.f32 %v1109, 0.0
  %v1190 = vmax.f32 %v1112, 0.0
  %v1191 = vmax.f32 %v1114, 0.0
  %v1192 = vmax.f32 %v1117, 0.0
  %v1193 = vmax.f32 %v1119, 0.0
  %v1194 = vmax.f32 %v1122, 0.0
  %v1195 = vmax.f32 %v1124, 0.0
  %v1196 = vmax.f32 %v1127, 0.0
  %v1197 = vmax.f32 %v1129, 0.0
  %v1198 = vmax.f32 %v1132, 0.0
  %v1199 = vmax.f32 %v1134, 0.0
  %v1200 = vpack.c.bf16 %v1137, %v1136
  %v1201 = vpack.c.bf16 %v1139, %v1138
  %v1202 = vpack.c.bf16 %v1141, %v1140
  %v1203 = vpack.c.bf16 %v1143, %v1142
  %v1204 = vpack.c.bf16 %v1145, %v1144
  %v1205 = vpack.c.bf16 %v1147, %v1146
  %v1206 = vpack.c.bf16 %v1149, %v1148
  %v1207 = vpack.c.bf16 %v1151, %v1150
  %v1208 = vpack.c.bf16 %v1153, %v1152
  %v1209 = vpack.c.bf16 %v1155, %v1154
  %v1210 = vpack.c.bf16 %v1157, %v1156
  %v1211 = vpack.c.bf16 %v1159, %v1158
  %v1212 = vpack.c.bf16 %v1161, %v1160
  %v1213 = vpack.c.bf16 %v1163, %v1162
  %v1214 = vpack.c.bf16 %v1165, %v1164
  %v1215 = vpack.c.bf16 %v1167, %v1166
  %v1216 = vpack.c.bf16 %v1169, %v1168
  %v1217 = vpack.c.bf16 %v1171, %v1170
  %v1218 = vpack.c.bf16 %v1173, %v1172
  %v1219 = vpack.c.bf16 %v1175, %v1174
  %v1220 = vpack.c.bf16 %v1177, %v1176
  %v1221 = vpack.c.bf16 %v1179, %v1178
  %v1222 = vpack.c.bf16 %v1181, %v1180
  %v1223 = vpack.c.bf16 %v1183, %v1182
  %v1224 = vpack.c.bf16 %v1185, %v1184
  %v1225 = vpack.c.bf16 %v1187, %v1186
  %v1226 = vpack.c.bf16 %v1189, %v1188
  %v1227 = vpack.c.bf16 %v1191, %v1190
  %v1228 = vpack.c.bf16 %v1193, %v1192
  %v1229 = vpack.c.bf16 %v1195, %v1194
  %v1230 = vpack.c.bf16 %v1197, %v1196
  %v1231 = vpack.c.bf16 %v1199, %v1198
  %v1232 = vld [vmem:[%s2 + $0x10] sm:$0xff]
  %v1233 = vld [vmem:[%s2 + $0x18] sm:$0xff]
  %v1236 = vunpack.c.l.b16 %v1232
  %v1237 = vunpack.c.h.b16 %v1232
  %v1238 = vunpack.c.l.b16 %v1233
  %v1239 = vunpack.c.h.b16 %v1233
  %v1240 = vpack.c.b16 %v1236, %v1236
  %v1241 = vpack.c.b16 %v1237, %v1237
  %v1242 = vpack.c.b16 %v1238, %v1238
  %v1243 = vpack.c.b16 %v1239, %v1239
  %1248 = vmatpush.bf16.msra.mxu0 %v1207
  %1249 = vmatpush.bf16.msra.mxu0 %v1206
  %1250 = vmatpush.bf16.msra.mxu0 %v1205
  %1251 = vmatpush.bf16.msra.mxu0 %v1204
  %1252 = vmatpush.bf16.msra.mxu0 %v1203
  %1253 = vmatpush.bf16.msra.mxu0 %v1202
  %1254 = vmatpush.bf16.msra.mxu0 %v1201
  %1255 = vmatpush.bf16.msra.mxu0 %v1200
  %1256 = vmatmul.bf16.gmra.mxu0 %v1240
  %v1257 = vpop.f32.mrf.mxu0
  %v1258 = vadd.f32 0.0, %v1257
  %v1259 = vpop.f32.mrf.mxu0
  %1260 = vdwg.mxu0
  %1261 = vmatpush.bf16.msra.mxu0 %v1215
  %1262 = vmatpush.bf16.msra.mxu0 %v1214
  %1263 = vmatpush.bf16.msra.mxu0 %v1213
  %1264 = vmatpush.bf16.msra.mxu0 %v1212
  %1265 = vmatpush.bf16.msra.mxu0 %v1211
  %1266 = vmatpush.bf16.msra.mxu0 %v1210
  %1267 = vmatpush.bf16.msra.mxu0 %v1209
  %1268 = vmatpush.bf16.msra.mxu0 %v1208
  %1269 = vmatmul.bf16.gmra.mxu0 %v1241
  %v1270 = vpop.f32.mrf.mxu0
  %v1271 = vadd.f32 %v1258, %v1270
  %v1272 = vpop.f32.mrf.mxu0
  %1273 = vdwg.mxu0
  %1274 = vmatpush.bf16.msra.mxu0 %v1223
  %1275 = vmatpush.bf16.msra.mxu0 %v1222
  %1276 = vmatpush.bf16.msra.mxu0 %v1221
  %1277 = vmatpush.bf16.msra.mxu0 %v1220
  %1278 = vmatpush.bf16.msra.mxu0 %v1219
  %1279 = vmatpush.bf16.msra.mxu0 %v1218
  %1280 = vmatpush.bf16.msra.mxu0 %v1217
  %1281 = vmatpush.bf16.msra.mxu0 %v1216
  %1282 = vmatmul.bf16.gmra.mxu0 %v1242
  %v1283 = vpop.f32.mrf.mxu0
  %v1284 = vadd.f32 %v1271, %v1283
  %v1285 = vpop.f32.mrf.mxu0
  %1286 = vdwg.mxu0
  %1287 = vmatpush.bf16.msra.mxu0 %v1231
  %1288 = vmatpush.bf16.msra.mxu0 %v1230
  %1289 = vmatpush.bf16.msra.mxu0 %v1229
  %1290 = vmatpush.bf16.msra.mxu0 %v1228
  %1291 = vmatpush.bf16.msra.mxu0 %v1227
  %1292 = vmatpush.bf16.msra.mxu0 %v1226
  %1293 = vmatpush.bf16.msra.mxu0 %v1225
  %1294 = vmatpush.bf16.msra.mxu0 %v1224
  %1295 = vmatmul.bf16.gmra.mxu0 %v1243
  %v1296 = vpop.f32.mrf.mxu0
  %v1297 = vadd.f32 %v1284, %v1296
  %v1298 = vpop.f32.mrf.mxu0
  %1299 = vdwg.mxu0
  %v1302 = vunpack.c.l.b16 %v645
  %v1303 = vunpack.c.h.b16 %v645
  %v1304 = vunpack.c.l.b16 %v646
  %v1305 = vunpack.c.h.b16 %v646
  %v1306 = vpack.c.b16 %v1302, %v1302
  %v1307 = vpack.c.b16 %v1303, %v1303
  %v1308 = vpack.c.b16 %v1304, %v1304
  %v1309 = vpack.c.b16 %v1305, %v1305
  %1314 = vmatpush.bf16.msra.mxu0 %v620
  %1315 = vmatpush.bf16.msra.mxu0 %v619
  %1316 = vmatpush.bf16.msra.mxu0 %v618
  %1317 = vmatpush.bf16.msra.mxu0 %v617
  %1318 = vmatpush.bf16.msra.mxu0 %v616
  %1319 = vmatpush.bf16.msra.mxu0 %v615
  %1320 = vmatpush.bf16.msra.mxu0 %v614
  %1321 = vmatpush.bf16.msra.mxu0 %v613
  %1322 = vmatmul.bf16.gmra.mxu0 %v1306
  %v1323 = vpop.f32.mrf.mxu0
  %v1324 = vadd.f32 %v1297, %v1323
  %v1325 = vpop.f32.mrf.mxu0
  %1326 = vdwg.mxu0
  %1327 = vmatpush.bf16.msra.mxu0 %v628
  %1328 = vmatpush.bf16.msra.mxu0 %v627
  %1329 = vmatpush.bf16.msra.mxu0 %v626
  %1330 = vmatpush.bf16.msra.mxu0 %v625
  %1331 = vmatpush.bf16.msra.mxu0 %v624
  %1332 = vmatpush.bf16.msra.mxu0 %v623
  %1333 = vmatpush.bf16.msra.mxu0 %v622
  %1334 = vmatpush.bf16.msra.mxu0 %v621
  %1335 = vmatmul.bf16.gmra.mxu0 %v1307
  %v1336 = vpop.f32.mrf.mxu0
  %v1337 = vadd.f32 %v1324, %v1336
  %v1338 = vpop.f32.mrf.mxu0
  %1339 = vdwg.mxu0
  %1340 = vmatpush.bf16.msra.mxu0 %v636
  %1341 = vmatpush.bf16.msra.mxu0 %v635
  %1342 = vmatpush.bf16.msra.mxu0 %v634
  %1343 = vmatpush.bf16.msra.mxu0 %v633
  %1344 = vmatpush.bf16.msra.mxu0 %v632
  %1345 = vmatpush.bf16.msra.mxu0 %v631
  %1346 = vmatpush.bf16.msra.mxu0 %v630
  %1347 = vmatpush.bf16.msra.mxu0 %v629
  %1348 = vmatmul.bf16.gmra.mxu0 %v1308
  %v1349 = vpop.f32.mrf.mxu0
  %v1350 = vadd.f32 %v1337, %v1349
  %v1351 = vpop.f32.mrf.mxu0
  %1352 = vdwg.mxu0
  %1353 = vmatpush.bf16.msra.mxu0 %v644
  %1354 = vmatpush.bf16.msra.mxu0 %v643
  %1355 = vmatpush.bf16.msra.mxu0 %v642
  %1356 = vmatpush.bf16.msra.mxu0 %v641
  %1357 = vmatpush.bf16.msra.mxu0 %v640
  %1358 = vmatpush.bf16.msra.mxu0 %v639
  %1359 = vmatpush.bf16.msra.mxu0 %v638
  %1360 = vmatpush.bf16.msra.mxu0 %v637
  %1361 = vmatmul.bf16.gmra.mxu0 %v1309
  %v1362 = vpop.f32.mrf.mxu0
  %v1363 = vadd.f32 %v1350, %v1362
  %v1364 = vpop.f32.mrf.mxu0
  %1365 = vdwg.mxu0
  %v1366 = vld [vmem:[%s1 + $0x200] sm:$0xf]
  %v1367 = vld [vmem:[%s1 + $0x204] sm:$0xf]
  %v1368 = vld [vmem:[%s1 + $0x208] sm:$0xf]
  %v1369 = vld [vmem:[%s1 + $0x20c] sm:$0xf]
  %v1370 = vld [vmem:[%s1 + $0x210] sm:$0xf]
  %v1371 = vld [vmem:[%s1 + $0x214] sm:$0xf]
  %v1372 = vld [vmem:[%s1 + $0x218] sm:$0xf]
  %v1373 = vld [vmem:[%s1 + $0x21c] sm:$0xf]
  %v1374 = vld [vmem:[%s1 + $0x220] sm:$0xf]
  %v1375 = vld [vmem:[%s1 + $0x224] sm:$0xf]
  %v1376 = vld [vmem:[%s1 + $0x228] sm:$0xf]
  %v1377 = vld [vmem:[%s1 + $0x22c] sm:$0xf]
  %v1378 = vld [vmem:[%s1 + $0x230] sm:$0xf]
  %v1379 = vld [vmem:[%s1 + $0x234] sm:$0xf]
  %v1380 = vld [vmem:[%s1 + $0x238] sm:$0xf]
  %v1381 = vld [vmem:[%s1 + $0x23c] sm:$0xf]
  %v1382 = vld [vmem:[%s1 + $0x240] sm:$0xf]
  %v1383 = vld [vmem:[%s1 + $0x244] sm:$0xf]
  %v1384 = vld [vmem:[%s1 + $0x248] sm:$0xf]
  %v1385 = vld [vmem:[%s1 + $0x24c] sm:$0xf]
  %v1386 = vld [vmem:[%s1 + $0x250] sm:$0xf]
  %v1387 = vld [vmem:[%s1 + $0x254] sm:$0xf]
  %v1388 = vld [vmem:[%s1 + $0x258] sm:$0xf]
  %v1389 = vld [vmem:[%s1 + $0x25c] sm:$0xf]
  %v1390 = vld [vmem:[%s1 + $0x260] sm:$0xf]
  %v1391 = vld [vmem:[%s1 + $0x264] sm:$0xf]
  %v1392 = vld [vmem:[%s1 + $0x268] sm:$0xf]
  %v1393 = vld [vmem:[%s1 + $0x26c] sm:$0xf]
  %v1394 = vld [vmem:[%s1 + $0x270] sm:$0xf]
  %v1395 = vld [vmem:[%s1 + $0x274] sm:$0xf]
  %v1396 = vld [vmem:[%s1 + $0x278] sm:$0xf]
  %v1397 = vld [vmem:[%s1 + $0x27c] sm:$0xf]
  %v1398 = vld [vmem:[%s1 + $0x280] sm:$0xf]
  %v1399 = vld [vmem:[%s1 + $0x284] sm:$0xf]
  %v1400 = vld [vmem:[%s1 + $0x288] sm:$0xf]
  %v1401 = vld [vmem:[%s1 + $0x28c] sm:$0xf]
  %v1402 = vld [vmem:[%s1 + $0x290] sm:$0xf]
  %v1403 = vld [vmem:[%s1 + $0x294] sm:$0xf]
  %v1404 = vld [vmem:[%s1 + $0x298] sm:$0xf]
  %v1405 = vld [vmem:[%s1 + $0x29c] sm:$0xf]
  %v1406 = vld [vmem:[%s1 + $0x2a0] sm:$0xf]
  %v1407 = vld [vmem:[%s1 + $0x2a4] sm:$0xf]
  %v1408 = vld [vmem:[%s1 + $0x2a8] sm:$0xf]
  %v1409 = vld [vmem:[%s1 + $0x2ac] sm:$0xf]
  %v1410 = vld [vmem:[%s1 + $0x2b0] sm:$0xf]
  %v1411 = vld [vmem:[%s1 + $0x2b4] sm:$0xf]
  %v1412 = vld [vmem:[%s1 + $0x2b8] sm:$0xf]
  %v1413 = vld [vmem:[%s1 + $0x2bc] sm:$0xf]
  %v1414 = vld [vmem:[%s1 + $0x2c0] sm:$0xf]
  %v1415 = vld [vmem:[%s1 + $0x2c4] sm:$0xf]
  %v1416 = vld [vmem:[%s1 + $0x2c8] sm:$0xf]
  %v1417 = vld [vmem:[%s1 + $0x2cc] sm:$0xf]
  %v1418 = vld [vmem:[%s1 + $0x2d0] sm:$0xf]
  %v1419 = vld [vmem:[%s1 + $0x2d4] sm:$0xf]
  %v1420 = vld [vmem:[%s1 + $0x2d8] sm:$0xf]
  %v1421 = vld [vmem:[%s1 + $0x2dc] sm:$0xf]
  %v1422 = vld [vmem:[%s1 + $0x2e0] sm:$0xf]
  %v1423 = vld [vmem:[%s1 + $0x2e4] sm:$0xf]
  %v1424 = vld [vmem:[%s1 + $0x2e8] sm:$0xf]
  %v1425 = vld [vmem:[%s1 + $0x2ec] sm:$0xf]
  %v1426 = vld [vmem:[%s1 + $0x2f0] sm:$0xf]
  %v1427 = vld [vmem:[%s1 + $0x2f4] sm:$0xf]
  %v1428 = vld [vmem:[%s1 + $0x2f8] sm:$0xf]
  %v1429 = vld [vmem:[%s1 + $0x2fc] sm:$0xf]
  %v1494 = vunpack.c.l.b16 %v1366
  %v1495 = vunpack.c.l.b16 %v1367
  %v1496 = vunpack.c.l.b16 %v1368
  %v1497 = vunpack.c.l.b16 %v1369
  %v1498 = vunpack.c.l.b16 %v1370
  %v1499 = vunpack.c.l.b16 %v1371
  %v1500 = vunpack.c.l.b16 %v1372
  %v1501 = vunpack.c.l.b16 %v1373
  %v1502 = vunpack.c.l.b16 %v1374
  %v1503 = vunpack.c.l.b16 %v1375
  %v1504 = vunpack.c.l.b16 %v1376
  %v1505 = vunpack.c.l.b16 %v1377
  %v1506 = vunpack.c.l.b16 %v1378
  %v1507 = vunpack.c.l.b16 %v1379
  %v1508 = vunpack.c.l.b16 %v1380
  %v1509 = vunpack.c.l.b16 %v1381
  %v1510 = vunpack.c.l.b16 %v1382
  %v1511 = vunpack.c.l.b16 %v1383
  %v1512 = vunpack.c.l.b16 %v1384
  %v1513 = vunpack.c.l.b16 %v1385
  %v1514 = vunpack.c.l.b16 %v1386
  %v1515 = vunpack.c.l.b16 %v1387
  %v1516 = vunpack.c.l.b16 %v1388
  %v1517 = vunpack.c.l.b16 %v1389
  %v1518 = vunpack.c.l.b16 %v1390
  %v1519 = vunpack.c.l.b16 %v1391
  %v1520 = vunpack.c.l.b16 %v1392
  %v1521 = vunpack.c.l.b16 %v1393
  %v1522 = vunpack.c.l.b16 %v1394
  %v1523 = vunpack.c.l.b16 %v1395
  %v1524 = vunpack.c.l.b16 %v1396
  %v1525 = vunpack.c.l.b16 %v1397
  %v1526 = vunpack.c.l.b16 %v1398
  %v1527 = vunpack.c.l.b16 %v1399
  %v1528 = vunpack.c.l.b16 %v1400
  %v1529 = vunpack.c.l.b16 %v1401
  %v1530 = vunpack.c.l.b16 %v1402
  %v1531 = vunpack.c.l.b16 %v1403
  %v1532 = vunpack.c.l.b16 %v1404
  %v1533 = vunpack.c.l.b16 %v1405
  %v1534 = vunpack.c.l.b16 %v1406
  %v1535 = vunpack.c.l.b16 %v1407
  %v1536 = vunpack.c.l.b16 %v1408
  %v1537 = vunpack.c.l.b16 %v1409
  %v1538 = vunpack.c.l.b16 %v1410
  %v1539 = vunpack.c.l.b16 %v1411
  %v1540 = vunpack.c.l.b16 %v1412
  %v1541 = vunpack.c.l.b16 %v1413
  %v1542 = vunpack.c.l.b16 %v1414
  %v1543 = vunpack.c.l.b16 %v1415
  %v1544 = vunpack.c.l.b16 %v1416
  %v1545 = vunpack.c.l.b16 %v1417
  %v1546 = vunpack.c.l.b16 %v1418
  %v1547 = vunpack.c.l.b16 %v1419
  %v1548 = vunpack.c.l.b16 %v1420
  %v1549 = vunpack.c.l.b16 %v1421
  %v1550 = vunpack.c.l.b16 %v1422
  %v1551 = vunpack.c.l.b16 %v1423
  %v1552 = vunpack.c.l.b16 %v1424
  %v1553 = vunpack.c.l.b16 %v1425
  %v1554 = vunpack.c.l.b16 %v1426
  %v1555 = vunpack.c.l.b16 %v1427
  %v1556 = vunpack.c.l.b16 %v1428
  %v1557 = vunpack.c.l.b16 %v1429
  %v1558 = vpack.c.b16 %v1495, %v1494
  %v1559 = vpack.c.b16 %v1497, %v1496
  %v1560 = vpack.c.b16 %v1499, %v1498
  %v1561 = vpack.c.b16 %v1501, %v1500
  %v1562 = vpack.c.b16 %v1503, %v1502
  %v1563 = vpack.c.b16 %v1505, %v1504
  %v1564 = vpack.c.b16 %v1507, %v1506
  %v1565 = vpack.c.b16 %v1509, %v1508
  %v1566 = vpack.c.b16 %v1511, %v1510
  %v1567 = vpack.c.b16 %v1513, %v1512
  %v1568 = vpack.c.b16 %v1515, %v1514
  %v1569 = vpack.c.b16 %v1517, %v1516
  %v1570 = vpack.c.b16 %v1519, %v1518
  %v1571 = vpack.c.b16 %v1521, %v1520
  %v1572 = vpack.c.b16 %v1523, %v1522
  %v1573 = vpack.c.b16 %v1525, %v1524
  %v1574 = vpack.c.b16 %v1527, %v1526
  %v1575 = vpack.c.b16 %v1529, %v1528
  %v1576 = vpack.c.b16 %v1531, %v1530
  %v1577 = vpack.c.b16 %v1533, %v1532
  %v1578 = vpack.c.b16 %v1535, %v1534
  %v1579 = vpack.c.b16 %v1537, %v1536
  %v1580 = vpack.c.b16 %v1539, %v1538
  %v1581 = vpack.c.b16 %v1541, %v1540
  %v1582 = vpack.c.b16 %v1543, %v1542
  %v1583 = vpack.c.b16 %v1545, %v1544
  %v1584 = vpack.c.b16 %v1547, %v1546
  %v1585 = vpack.c.b16 %v1549, %v1548
  %v1586 = vpack.c.b16 %v1551, %v1550
  %v1587 = vpack.c.b16 %v1553, %v1552
  %v1588 = vpack.c.b16 %v1555, %v1554
  %v1589 = vpack.c.b16 %v1557, %v1556
  %v1591 = vsel %vm283, %v1558, 0
  %v1594 = vsel %vm283, %v1559, 0
  %v1597 = vsel %vm283, %v1560, 0
  %v1600 = vsel %vm283, %v1561, 0
  %v1603 = vsel %vm283, %v1562, 0
  %v1606 = vsel %vm283, %v1563, 0
  %v1609 = vsel %vm283, %v1564, 0
  %v1612 = vsel %vm283, %v1565, 0
  %v1615 = vsel %vm283, %v1566, 0
  %v1618 = vsel %vm283, %v1567, 0
  %v1621 = vsel %vm283, %v1568, 0
  %v1624 = vsel %vm283, %v1569, 0
  %v1627 = vsel %vm283, %v1570, 0
  %v1630 = vsel %vm283, %v1571, 0
  %v1633 = vsel %vm283, %v1572, 0
  %v1636 = vsel %vm283, %v1573, 0
  %v1639 = vsel %vm283, %v1574, 0
  %v1642 = vsel %vm283, %v1575, 0
  %v1645 = vsel %vm283, %v1576, 0
  %v1648 = vsel %vm283, %v1577, 0
  %v1651 = vsel %vm283, %v1578, 0
  %v1654 = vsel %vm283, %v1579, 0
  %v1657 = vsel %vm283, %v1580, 0
  %v1660 = vsel %vm283, %v1581, 0
  %v1663 = vsel %vm283, %v1582, 0
  %v1666 = vsel %vm283, %v1583, 0
  %v1669 = vsel %vm283, %v1584, 0
  %v1672 = vsel %vm283, %v1585, 0
  %v1675 = vsel %vm283, %v1586, 0
  %v1678 = vsel %vm283, %v1587, 0
  %v1681 = vsel %vm283, %v1588, 0
  %v1684 = vsel %vm283, %v1589, 0
  %1686 = vmatpush.bf16.msra.mxu0 0
  %1687 = vmatpush.bf16.msra.mxu0 0
  %1688 = vmatpush.bf16.msra.mxu0 0
  %1689 = vmatpush.bf16.msra.mxu0 0
  %1690 = vmatpush.bf16.msra.mxu0 0
  %1691 = vmatpush.bf16.msra.mxu0 %v58
  %1692 = vmatpush.bf16.msra.mxu0 %v57
  %1693 = vmatpush.bf16.msra.mxu0 %v56
  %1694 = vmatmul.bf16.gmra.mxu0 %v1591
  %v1695 = vpop.f32.mrf.mxu0
  %v1696 = vadd.f32 0.0, %v1695
  %v1697 = vpop.f32.mrf.mxu0
  %v1698 = vadd.f32 0.0, %v1697
  %1699 = vmatmul.bf16.gmra.mxu0 %v1594
  %v1700 = vpop.f32.mrf.mxu0
  %v1701 = vadd.f32 0.0, %v1700
  %v1702 = vpop.f32.mrf.mxu0
  %v1703 = vadd.f32 0.0, %v1702
  %1704 = vmatmul.bf16.gmra.mxu0 %v1597
  %v1705 = vpop.f32.mrf.mxu0
  %v1706 = vadd.f32 0.0, %v1705
  %v1707 = vpop.f32.mrf.mxu0
  %v1708 = vadd.f32 0.0, %v1707
  %1709 = vmatmul.bf16.gmra.mxu0 %v1600
  %v1710 = vpop.f32.mrf.mxu0
  %v1711 = vadd.f32 0.0, %v1710
  %v1712 = vpop.f32.mrf.mxu0
  %v1713 = vadd.f32 0.0, %v1712
  %1714 = vmatmul.bf16.gmra.mxu0 %v1603
  %v1715 = vpop.f32.mrf.mxu0
  %v1716 = vadd.f32 0.0, %v1715
  %v1717 = vpop.f32.mrf.mxu0
  %v1718 = vadd.f32 0.0, %v1717
  %1719 = vmatmul.bf16.gmra.mxu0 %v1606
  %v1720 = vpop.f32.mrf.mxu0
  %v1721 = vadd.f32 0.0, %v1720
  %v1722 = vpop.f32.mrf.mxu0
  %v1723 = vadd.f32 0.0, %v1722
  %1724 = vmatmul.bf16.gmra.mxu0 %v1609
  %v1725 = vpop.f32.mrf.mxu0
  %v1726 = vadd.f32 0.0, %v1725
  %v1727 = vpop.f32.mrf.mxu0
  %v1728 = vadd.f32 0.0, %v1727
  %1729 = vmatmul.bf16.gmra.mxu0 %v1612
  %v1730 = vpop.f32.mrf.mxu0
  %v1731 = vadd.f32 0.0, %v1730
  %v1732 = vpop.f32.mrf.mxu0
  %v1733 = vadd.f32 0.0, %v1732
  %1734 = vmatmul.bf16.gmra.mxu0 %v1615
  %v1735 = vpop.f32.mrf.mxu0
  %v1736 = vadd.f32 0.0, %v1735
  %v1737 = vpop.f32.mrf.mxu0
  %v1738 = vadd.f32 0.0, %v1737
  %1739 = vmatmul.bf16.gmra.mxu0 %v1618
  %v1740 = vpop.f32.mrf.mxu0
  %v1741 = vadd.f32 0.0, %v1740
  %v1742 = vpop.f32.mrf.mxu0
  %v1743 = vadd.f32 0.0, %v1742
  %1744 = vmatmul.bf16.gmra.mxu0 %v1621
  %v1745 = vpop.f32.mrf.mxu0
  %v1746 = vadd.f32 0.0, %v1745
  %v1747 = vpop.f32.mrf.mxu0
  %v1748 = vadd.f32 0.0, %v1747
  %1749 = vmatmul.bf16.gmra.mxu0 %v1624
  %v1750 = vpop.f32.mrf.mxu0
  %v1751 = vadd.f32 0.0, %v1750
  %v1752 = vpop.f32.mrf.mxu0
  %v1753 = vadd.f32 0.0, %v1752
  %1754 = vmatmul.bf16.gmra.mxu0 %v1627
  %v1755 = vpop.f32.mrf.mxu0
  %v1756 = vadd.f32 0.0, %v1755
  %v1757 = vpop.f32.mrf.mxu0
  %v1758 = vadd.f32 0.0, %v1757
  %1759 = vmatmul.bf16.gmra.mxu0 %v1630
  %v1760 = vpop.f32.mrf.mxu0
  %v1761 = vadd.f32 0.0, %v1760
  %v1762 = vpop.f32.mrf.mxu0
  %v1763 = vadd.f32 0.0, %v1762
  %1764 = vmatmul.bf16.gmra.mxu0 %v1633
  %v1765 = vpop.f32.mrf.mxu0
  %v1766 = vadd.f32 0.0, %v1765
  %v1767 = vpop.f32.mrf.mxu0
  %v1768 = vadd.f32 0.0, %v1767
  %1769 = vmatmul.bf16.gmra.mxu0 %v1636
  %v1770 = vpop.f32.mrf.mxu0
  %v1771 = vadd.f32 0.0, %v1770
  %v1772 = vpop.f32.mrf.mxu0
  %v1773 = vadd.f32 0.0, %v1772
  %1774 = vmatmul.bf16.gmra.mxu0 %v1639
  %v1775 = vpop.f32.mrf.mxu0
  %v1776 = vadd.f32 0.0, %v1775
  %v1777 = vpop.f32.mrf.mxu0
  %v1778 = vadd.f32 0.0, %v1777
  %1779 = vmatmul.bf16.gmra.mxu0 %v1642
  %v1780 = vpop.f32.mrf.mxu0
  %v1781 = vadd.f32 0.0, %v1780
  %v1782 = vpop.f32.mrf.mxu0
  %v1783 = vadd.f32 0.0, %v1782
  %1784 = vmatmul.bf16.gmra.mxu0 %v1645
  %v1785 = vpop.f32.mrf.mxu0
  %v1786 = vadd.f32 0.0, %v1785
  %v1787 = vpop.f32.mrf.mxu0
  %v1788 = vadd.f32 0.0, %v1787
  %1789 = vmatmul.bf16.gmra.mxu0 %v1648
  %v1790 = vpop.f32.mrf.mxu0
  %v1791 = vadd.f32 0.0, %v1790
  %v1792 = vpop.f32.mrf.mxu0
  %v1793 = vadd.f32 0.0, %v1792
  %1794 = vmatmul.bf16.gmra.mxu0 %v1651
  %v1795 = vpop.f32.mrf.mxu0
  %v1796 = vadd.f32 0.0, %v1795
  %v1797 = vpop.f32.mrf.mxu0
  %v1798 = vadd.f32 0.0, %v1797
  %1799 = vmatmul.bf16.gmra.mxu0 %v1654
  %v1800 = vpop.f32.mrf.mxu0
  %v1801 = vadd.f32 0.0, %v1800
  %v1802 = vpop.f32.mrf.mxu0
  %v1803 = vadd.f32 0.0, %v1802
  %1804 = vmatmul.bf16.gmra.mxu0 %v1657
  %v1805 = vpop.f32.mrf.mxu0
  %v1806 = vadd.f32 0.0, %v1805
  %v1807 = vpop.f32.mrf.mxu0
  %v1808 = vadd.f32 0.0, %v1807
  %1809 = vmatmul.bf16.gmra.mxu0 %v1660
  %v1810 = vpop.f32.mrf.mxu0
  %v1811 = vadd.f32 0.0, %v1810
  %v1812 = vpop.f32.mrf.mxu0
  %v1813 = vadd.f32 0.0, %v1812
  %1814 = vmatmul.bf16.gmra.mxu0 %v1663
  %v1815 = vpop.f32.mrf.mxu0
  %v1816 = vadd.f32 0.0, %v1815
  %v1817 = vpop.f32.mrf.mxu0
  %v1818 = vadd.f32 0.0, %v1817
  %1819 = vmatmul.bf16.gmra.mxu0 %v1666
  %v1820 = vpop.f32.mrf.mxu0
  %v1821 = vadd.f32 0.0, %v1820
  %v1822 = vpop.f32.mrf.mxu0
  %v1823 = vadd.f32 0.0, %v1822
  %1824 = vmatmul.bf16.gmra.mxu0 %v1669
  %v1825 = vpop.f32.mrf.mxu0
  %v1826 = vadd.f32 0.0, %v1825
  %v1827 = vpop.f32.mrf.mxu0
  %v1828 = vadd.f32 0.0, %v1827
  %1829 = vmatmul.bf16.gmra.mxu0 %v1672
  %v1830 = vpop.f32.mrf.mxu0
  %v1831 = vadd.f32 0.0, %v1830
  %v1832 = vpop.f32.mrf.mxu0
  %v1833 = vadd.f32 0.0, %v1832
  %1834 = vmatmul.bf16.gmra.mxu0 %v1675
  %v1835 = vpop.f32.mrf.mxu0
  %v1836 = vadd.f32 0.0, %v1835
  %v1837 = vpop.f32.mrf.mxu0
  %v1838 = vadd.f32 0.0, %v1837
  %1839 = vmatmul.bf16.gmra.mxu0 %v1678
  %v1840 = vpop.f32.mrf.mxu0
  %v1841 = vadd.f32 0.0, %v1840
  %v1842 = vpop.f32.mrf.mxu0
  %v1843 = vadd.f32 0.0, %v1842
  %1844 = vmatmul.bf16.gmra.mxu0 %v1681
  %v1845 = vpop.f32.mrf.mxu0
  %v1846 = vadd.f32 0.0, %v1845
  %v1847 = vpop.f32.mrf.mxu0
  %v1848 = vadd.f32 0.0, %v1847
  %1849 = vmatmul.bf16.gmra.mxu0 %v1684
  %v1850 = vpop.f32.mrf.mxu0
  %v1851 = vadd.f32 0.0, %v1850
  %v1852 = vpop.f32.mrf.mxu0
  %v1853 = vadd.f32 0.0, %v1852
  %1854 = vdwg.mxu0
  %v1855 = vmax.f32 %v1696, 0.0
  %v1856 = vmax.f32 %v1698, 0.0
  %v1857 = vmax.f32 %v1701, 0.0
  %v1858 = vmax.f32 %v1703, 0.0
  %v1859 = vmax.f32 %v1706, 0.0
  %v1860 = vmax.f32 %v1708, 0.0
  %v1861 = vmax.f32 %v1711, 0.0
  %v1862 = vmax.f32 %v1713, 0.0
  %v1863 = vmax.f32 %v1716, 0.0
  %v1864 = vmax.f32 %v1718, 0.0
  %v1865 = vmax.f32 %v1721, 0.0
  %v1866 = vmax.f32 %v1723, 0.0
  %v1867 = vmax.f32 %v1726, 0.0
  %v1868 = vmax.f32 %v1728, 0.0
  %v1869 = vmax.f32 %v1731, 0.0
  %v1870 = vmax.f32 %v1733, 0.0
  %v1871 = vmax.f32 %v1736, 0.0
  %v1872 = vmax.f32 %v1738, 0.0
  %v1873 = vmax.f32 %v1741, 0.0
  %v1874 = vmax.f32 %v1743, 0.0
  %v1875 = vmax.f32 %v1746, 0.0
  %v1876 = vmax.f32 %v1748, 0.0
  %v1877 = vmax.f32 %v1751, 0.0
  %v1878 = vmax.f32 %v1753, 0.0
  %v1879 = vmax.f32 %v1756, 0.0
  %v1880 = vmax.f32 %v1758, 0.0
  %v1881 = vmax.f32 %v1761, 0.0
  %v1882 = vmax.f32 %v1763, 0.0
  %v1883 = vmax.f32 %v1766, 0.0
  %v1884 = vmax.f32 %v1768, 0.0
  %v1885 = vmax.f32 %v1771, 0.0
  %v1886 = vmax.f32 %v1773, 0.0
  %v1887 = vmax.f32 %v1776, 0.0
  %v1888 = vmax.f32 %v1778, 0.0
  %v1889 = vmax.f32 %v1781, 0.0
  %v1890 = vmax.f32 %v1783, 0.0
  %v1891 = vmax.f32 %v1786, 0.0
  %v1892 = vmax.f32 %v1788, 0.0
  %v1893 = vmax.f32 %v1791, 0.0
  %v1894 = vmax.f32 %v1793, 0.0
  %v1895 = vmax.f32 %v1796, 0.0
  %v1896 = vmax.f32 %v1798, 0.0
  %v1897 = vmax.f32 %v1801, 0.0
  %v1898 = vmax.f32 %v1803, 0.0
  %v1899 = vmax.f32 %v1806, 0.0
  %v1900 = vmax.f32 %v1808, 0.0
  %v1901 = vmax.f32 %v1811, 0.0
  %v1902 = vmax.f32 %v1813, 0.0
  %v1903 = vmax.f32 %v1816, 0.0
  %v1904 = vmax.f32 %v1818, 0.0
  %v1905 = vmax.f32 %v1821, 0.0
  %v1906 = vmax.f32 %v1823, 0.0
  %v1907 = vmax.f32 %v1826, 0.0
  %v1908 = vmax.f32 %v1828, 0.0
  %v1909 = vmax.f32 %v1831, 0.0
  %v1910 = vmax.f32 %v1833, 0.0
  %v1911 = vmax.f32 %v1836, 0.0
  %v1912 = vmax.f32 %v1838, 0.0
  %v1913 = vmax.f32 %v1841, 0.0
  %v1914 = vmax.f32 %v1843, 0.0
  %v1915 = vmax.f32 %v1846, 0.0
  %v1916 = vmax.f32 %v1848, 0.0
  %v1917 = vmax.f32 %v1851, 0.0
  %v1918 = vmax.f32 %v1853, 0.0
  %v1919 = vpack.c.bf16 %v1856, %v1855
  %v1920 = vpack.c.bf16 %v1858, %v1857
  %v1921 = vpack.c.bf16 %v1860, %v1859
  %v1922 = vpack.c.bf16 %v1862, %v1861
  %v1923 = vpack.c.bf16 %v1864, %v1863
  %v1924 = vpack.c.bf16 %v1866, %v1865
  %v1925 = vpack.c.bf16 %v1868, %v1867
  %v1926 = vpack.c.bf16 %v1870, %v1869
  %v1927 = vpack.c.bf16 %v1872, %v1871
  %v1928 = vpack.c.bf16 %v1874, %v1873
  %v1929 = vpack.c.bf16 %v1876, %v1875
  %v1930 = vpack.c.bf16 %v1878, %v1877
  %v1931 = vpack.c.bf16 %v1880, %v1879
  %v1932 = vpack.c.bf16 %v1882, %v1881
  %v1933 = vpack.c.bf16 %v1884, %v1883
  %v1934 = vpack.c.bf16 %v1886, %v1885
  %v1935 = vpack.c.bf16 %v1888, %v1887
  %v1936 = vpack.c.bf16 %v1890, %v1889
  %v1937 = vpack.c.bf16 %v1892, %v1891
  %v1938 = vpack.c.bf16 %v1894, %v1893
  %v1939 = vpack.c.bf16 %v1896, %v1895
  %v1940 = vpack.c.bf16 %v1898, %v1897
  %v1941 = vpack.c.bf16 %v1900, %v1899
  %v1942 = vpack.c.bf16 %v1902, %v1901
  %v1943 = vpack.c.bf16 %v1904, %v1903
  %v1944 = vpack.c.bf16 %v1906, %v1905
  %v1945 = vpack.c.bf16 %v1908, %v1907
  %v1946 = vpack.c.bf16 %v1910, %v1909
  %v1947 = vpack.c.bf16 %v1912, %v1911
  %v1948 = vpack.c.bf16 %v1914, %v1913
  %v1949 = vpack.c.bf16 %v1916, %v1915
  %v1950 = vpack.c.bf16 %v1918, %v1917
  %v1951 = vld [vmem:[%s2 + $0x20] sm:$0xff]
  %v1952 = vld [vmem:[%s2 + $0x28] sm:$0xff]
  %v1955 = vunpack.c.l.b16 %v1951
  %v1956 = vunpack.c.h.b16 %v1951
  %v1957 = vunpack.c.l.b16 %v1952
  %v1958 = vunpack.c.h.b16 %v1952
  %v1959 = vpack.c.b16 %v1955, %v1955
  %v1960 = vpack.c.b16 %v1956, %v1956
  %v1961 = vpack.c.b16 %v1957, %v1957
  %v1962 = vpack.c.b16 %v1958, %v1958
  %1967 = vmatpush.bf16.msra.mxu0 %v1926
  %1968 = vmatpush.bf16.msra.mxu0 %v1925
  %1969 = vmatpush.bf16.msra.mxu0 %v1924
  %1970 = vmatpush.bf16.msra.mxu0 %v1923
  %1971 = vmatpush.bf16.msra.mxu0 %v1922
  %1972 = vmatpush.bf16.msra.mxu0 %v1921
  %1973 = vmatpush.bf16.msra.mxu0 %v1920
  %1974 = vmatpush.bf16.msra.mxu0 %v1919
  %1975 = vmatmul.bf16.gmra.mxu0 %v1959
  %v1976 = vpop.f32.mrf.mxu0
  %v1977 = vadd.f32 0.0, %v1976
  %v1978 = vpop.f32.mrf.mxu0
  %1979 = vdwg.mxu0
  %1980 = vmatpush.bf16.msra.mxu0 %v1934
  %1981 = vmatpush.bf16.msra.mxu0 %v1933
  %1982 = vmatpush.bf16.msra.mxu0 %v1932
  %1983 = vmatpush.bf16.msra.mxu0 %v1931
  %1984 = vmatpush.bf16.msra.mxu0 %v1930
  %1985 = vmatpush.bf16.msra.mxu0 %v1929
  %1986 = vmatpush.bf16.msra.mxu0 %v1928
  %1987 = vmatpush.bf16.msra.mxu0 %v1927
  %1988 = vmatmul.bf16.gmra.mxu0 %v1960
  %v1989 = vpop.f32.mrf.mxu0
  %v1990 = vadd.f32 %v1977, %v1989
  %v1991 = vpop.f32.mrf.mxu0
  %1992 = vdwg.mxu0
  %1993 = vmatpush.bf16.msra.mxu0 %v1942
  %1994 = vmatpush.bf16.msra.mxu0 %v1941
  %1995 = vmatpush.bf16.msra.mxu0 %v1940
  %1996 = vmatpush.bf16.msra.mxu0 %v1939
  %1997 = vmatpush.bf16.msra.mxu0 %v1938
  %1998 = vmatpush.bf16.msra.mxu0 %v1937
  %1999 = vmatpush.bf16.msra.mxu0 %v1936
  %2000 = vmatpush.bf16.msra.mxu0 %v1935
  %2001 = vmatmul.bf16.gmra.mxu0 %v1961
  %v2002 = vpop.f32.mrf.mxu0
  %v2003 = vadd.f32 %v1990, %v2002
  %v2004 = vpop.f32.mrf.mxu0
  %2005 = vdwg.mxu0
  %2006 = vmatpush.bf16.msra.mxu0 %v1950
  %2007 = vmatpush.bf16.msra.mxu0 %v1949
  %2008 = vmatpush.bf16.msra.mxu0 %v1948
  %2009 = vmatpush.bf16.msra.mxu0 %v1947
  %2010 = vmatpush.bf16.msra.mxu0 %v1946
  %2011 = vmatpush.bf16.msra.mxu0 %v1945
  %2012 = vmatpush.bf16.msra.mxu0 %v1944
  %2013 = vmatpush.bf16.msra.mxu0 %v1943
  %2014 = vmatmul.bf16.gmra.mxu0 %v1962
  %v2015 = vpop.f32.mrf.mxu0
  %v2016 = vadd.f32 %v2003, %v2015
  %v2017 = vpop.f32.mrf.mxu0
  %2018 = vdwg.mxu0
  %v2019 = vadd.f32 %v1363, %v2016
  %v2020 = vld [vmem:[%s1 + $0x300] sm:$0xf]
  %v2021 = vld [vmem:[%s1 + $0x304] sm:$0xf]
  %v2022 = vld [vmem:[%s1 + $0x308] sm:$0xf]
  %v2023 = vld [vmem:[%s1 + $0x30c] sm:$0xf]
  %v2024 = vld [vmem:[%s1 + $0x310] sm:$0xf]
  %v2025 = vld [vmem:[%s1 + $0x314] sm:$0xf]
  %v2026 = vld [vmem:[%s1 + $0x318] sm:$0xf]
  %v2027 = vld [vmem:[%s1 + $0x31c] sm:$0xf]
  %v2028 = vld [vmem:[%s1 + $0x320] sm:$0xf]
  %v2029 = vld [vmem:[%s1 + $0x324] sm:$0xf]
  %v2030 = vld [vmem:[%s1 + $0x328] sm:$0xf]
  %v2031 = vld [vmem:[%s1 + $0x32c] sm:$0xf]
  %v2032 = vld [vmem:[%s1 + $0x330] sm:$0xf]
  %v2033 = vld [vmem:[%s1 + $0x334] sm:$0xf]
  %v2034 = vld [vmem:[%s1 + $0x338] sm:$0xf]
  %v2035 = vld [vmem:[%s1 + $0x33c] sm:$0xf]
  %v2036 = vld [vmem:[%s1 + $0x340] sm:$0xf]
  %v2037 = vld [vmem:[%s1 + $0x344] sm:$0xf]
  %v2038 = vld [vmem:[%s1 + $0x348] sm:$0xf]
  %v2039 = vld [vmem:[%s1 + $0x34c] sm:$0xf]
  %v2040 = vld [vmem:[%s1 + $0x350] sm:$0xf]
  %v2041 = vld [vmem:[%s1 + $0x354] sm:$0xf]
  %v2042 = vld [vmem:[%s1 + $0x358] sm:$0xf]
  %v2043 = vld [vmem:[%s1 + $0x35c] sm:$0xf]
  %v2044 = vld [vmem:[%s1 + $0x360] sm:$0xf]
  %v2045 = vld [vmem:[%s1 + $0x364] sm:$0xf]
  %v2046 = vld [vmem:[%s1 + $0x368] sm:$0xf]
  %v2047 = vld [vmem:[%s1 + $0x36c] sm:$0xf]
  %v2048 = vld [vmem:[%s1 + $0x370] sm:$0xf]
  %v2049 = vld [vmem:[%s1 + $0x374] sm:$0xf]
  %v2050 = vld [vmem:[%s1 + $0x378] sm:$0xf]
  %v2051 = vld [vmem:[%s1 + $0x37c] sm:$0xf]
  %v2052 = vld [vmem:[%s1 + $0x380] sm:$0xf]
  %v2053 = vld [vmem:[%s1 + $0x384] sm:$0xf]
  %v2054 = vld [vmem:[%s1 + $0x388] sm:$0xf]
  %v2055 = vld [vmem:[%s1 + $0x38c] sm:$0xf]
  %v2056 = vld [vmem:[%s1 + $0x390] sm:$0xf]
  %v2057 = vld [vmem:[%s1 + $0x394] sm:$0xf]
  %v2058 = vld [vmem:[%s1 + $0x398] sm:$0xf]
  %v2059 = vld [vmem:[%s1 + $0x39c] sm:$0xf]
  %v2060 = vld [vmem:[%s1 + $0x3a0] sm:$0xf]
  %v2061 = vld [vmem:[%s1 + $0x3a4] sm:$0xf]
  %v2062 = vld [vmem:[%s1 + $0x3a8] sm:$0xf]
  %v2063 = vld [vmem:[%s1 + $0x3ac] sm:$0xf]
  %v2064 = vld [vmem:[%s1 + $0x3b0] sm:$0xf]
  %v2065 = vld [vmem:[%s1 + $0x3b4] sm:$0xf]
  %v2066 = vld [vmem:[%s1 + $0x3b8] sm:$0xf]
  %v2067 = vld [vmem:[%s1 + $0x3bc] sm:$0xf]
  %v2068 = vld [vmem:[%s1 + $0x3c0] sm:$0xf]
  %v2069 = vld [vmem:[%s1 + $0x3c4] sm:$0xf]
  %v2070 = vld [vmem:[%s1 + $0x3c8] sm:$0xf]
  %v2071 = vld [vmem:[%s1 + $0x3cc] sm:$0xf]
  %v2072 = vld [vmem:[%s1 + $0x3d0] sm:$0xf]
  %v2073 = vld [vmem:[%s1 + $0x3d4] sm:$0xf]
  %v2074 = vld [vmem:[%s1 + $0x3d8] sm:$0xf]
  %v2075 = vld [vmem:[%s1 + $0x3dc] sm:$0xf]
  %v2076 = vld [vmem:[%s1 + $0x3e0] sm:$0xf]
  %v2077 = vld [vmem:[%s1 + $0x3e4] sm:$0xf]
  %v2078 = vld [vmem:[%s1 + $0x3e8] sm:$0xf]
  %v2079 = vld [vmem:[%s1 + $0x3ec] sm:$0xf]
  %v2080 = vld [vmem:[%s1 + $0x3f0] sm:$0xf]
  %v2081 = vld [vmem:[%s1 + $0x3f4] sm:$0xf]
  %v2082 = vld [vmem:[%s1 + $0x3f8] sm:$0xf]
  %v2083 = vld [vmem:[%s1 + $0x3fc] sm:$0xf]
  %v2148 = vunpack.c.l.b16 %v2020
  %v2149 = vunpack.c.l.b16 %v2021
  %v2150 = vunpack.c.l.b16 %v2022
  %v2151 = vunpack.c.l.b16 %v2023
  %v2152 = vunpack.c.l.b16 %v2024
  %v2153 = vunpack.c.l.b16 %v2025
  %v2154 = vunpack.c.l.b16 %v2026
  %v2155 = vunpack.c.l.b16 %v2027
  %v2156 = vunpack.c.l.b16 %v2028
  %v2157 = vunpack.c.l.b16 %v2029
  %v2158 = vunpack.c.l.b16 %v2030
  %v2159 = vunpack.c.l.b16 %v2031
  %v2160 = vunpack.c.l.b16 %v2032
  %v2161 = vunpack.c.l.b16 %v2033
  %v2162 = vunpack.c.l.b16 %v2034
  %v2163 = vunpack.c.l.b16 %v2035
  %v2164 = vunpack.c.l.b16 %v2036
  %v2165 = vunpack.c.l.b16 %v2037
  %v2166 = vunpack.c.l.b16 %v2038
  %v2167 = vunpack.c.l.b16 %v2039
  %v2168 = vunpack.c.l.b16 %v2040
  %v2169 = vunpack.c.l.b16 %v2041
  %v2170 = vunpack.c.l.b16 %v2042
  %v2171 = vunpack.c.l.b16 %v2043
  %v2172 = vunpack.c.l.b16 %v2044
  %v2173 = vunpack.c.l.b16 %v2045
  %v2174 = vunpack.c.l.b16 %v2046
  %v2175 = vunpack.c.l.b16 %v2047
  %v2176 = vunpack.c.l.b16 %v2048
  %v2177 = vunpack.c.l.b16 %v2049
  %v2178 = vunpack.c.l.b16 %v2050
  %v2179 = vunpack.c.l.b16 %v2051
  %v2180 = vunpack.c.l.b16 %v2052
  %v2181 = vunpack.c.l.b16 %v2053
  %v2182 = vunpack.c.l.b16 %v2054
  %v2183 = vunpack.c.l.b16 %v2055
  %v2184 = vunpack.c.l.b16 %v2056
  %v2185 = vunpack.c.l.b16 %v2057
  %v2186 = vunpack.c.l.b16 %v2058
  %v2187 = vunpack.c.l.b16 %v2059
  %v2188 = vunpack.c.l.b16 %v2060
  %v2189 = vunpack.c.l.b16 %v2061
  %v2190 = vunpack.c.l.b16 %v2062
  %v2191 = vunpack.c.l.b16 %v2063
  %v2192 = vunpack.c.l.b16 %v2064
  %v2193 = vunpack.c.l.b16 %v2065
  %v2194 = vunpack.c.l.b16 %v2066
  %v2195 = vunpack.c.l.b16 %v2067
  %v2196 = vunpack.c.l.b16 %v2068
  %v2197 = vunpack.c.l.b16 %v2069
  %v2198 = vunpack.c.l.b16 %v2070
  %v2199 = vunpack.c.l.b16 %v2071
  %v2200 = vunpack.c.l.b16 %v2072
  %v2201 = vunpack.c.l.b16 %v2073
  %v2202 = vunpack.c.l.b16 %v2074
  %v2203 = vunpack.c.l.b16 %v2075
  %v2204 = vunpack.c.l.b16 %v2076
  %v2205 = vunpack.c.l.b16 %v2077
  %v2206 = vunpack.c.l.b16 %v2078
  %v2207 = vunpack.c.l.b16 %v2079
  %v2208 = vunpack.c.l.b16 %v2080
  %v2209 = vunpack.c.l.b16 %v2081
  %v2210 = vunpack.c.l.b16 %v2082
  %v2211 = vunpack.c.l.b16 %v2083
  %v2212 = vpack.c.b16 %v2149, %v2148
  %v2213 = vpack.c.b16 %v2151, %v2150
  %v2214 = vpack.c.b16 %v2153, %v2152
  %v2215 = vpack.c.b16 %v2155, %v2154
  %v2216 = vpack.c.b16 %v2157, %v2156
  %v2217 = vpack.c.b16 %v2159, %v2158
  %v2218 = vpack.c.b16 %v2161, %v2160
  %v2219 = vpack.c.b16 %v2163, %v2162
  %v2220 = vpack.c.b16 %v2165, %v2164
  %v2221 = vpack.c.b16 %v2167, %v2166
  %v2222 = vpack.c.b16 %v2169, %v2168
  %v2223 = vpack.c.b16 %v2171, %v2170
  %v2224 = vpack.c.b16 %v2173, %v2172
  %v2225 = vpack.c.b16 %v2175, %v2174
  %v2226 = vpack.c.b16 %v2177, %v2176
  %v2227 = vpack.c.b16 %v2179, %v2178
  %v2228 = vpack.c.b16 %v2181, %v2180
  %v2229 = vpack.c.b16 %v2183, %v2182
  %v2230 = vpack.c.b16 %v2185, %v2184
  %v2231 = vpack.c.b16 %v2187, %v2186
  %v2232 = vpack.c.b16 %v2189, %v2188
  %v2233 = vpack.c.b16 %v2191, %v2190
  %v2234 = vpack.c.b16 %v2193, %v2192
  %v2235 = vpack.c.b16 %v2195, %v2194
  %v2236 = vpack.c.b16 %v2197, %v2196
  %v2237 = vpack.c.b16 %v2199, %v2198
  %v2238 = vpack.c.b16 %v2201, %v2200
  %v2239 = vpack.c.b16 %v2203, %v2202
  %v2240 = vpack.c.b16 %v2205, %v2204
  %v2241 = vpack.c.b16 %v2207, %v2206
  %v2242 = vpack.c.b16 %v2209, %v2208
  %v2243 = vpack.c.b16 %v2211, %v2210
  %v2245 = vsel %vm283, %v2212, 0
  %v2248 = vsel %vm283, %v2213, 0
  %v2251 = vsel %vm283, %v2214, 0
  %v2254 = vsel %vm283, %v2215, 0
  %v2257 = vsel %vm283, %v2216, 0
  %v2260 = vsel %vm283, %v2217, 0
  %v2263 = vsel %vm283, %v2218, 0
  %v2266 = vsel %vm283, %v2219, 0
  %v2269 = vsel %vm283, %v2220, 0
  %v2272 = vsel %vm283, %v2221, 0
  %v2275 = vsel %vm283, %v2222, 0
  %v2278 = vsel %vm283, %v2223, 0
  %v2281 = vsel %vm283, %v2224, 0
  %v2284 = vsel %vm283, %v2225, 0
  %v2287 = vsel %vm283, %v2226, 0
  %v2290 = vsel %vm283, %v2227, 0
  %v2293 = vsel %vm283, %v2228, 0
  %v2296 = vsel %vm283, %v2229, 0
  %v2299 = vsel %vm283, %v2230, 0
  %v2302 = vsel %vm283, %v2231, 0
  %v2305 = vsel %vm283, %v2232, 0
  %v2308 = vsel %vm283, %v2233, 0
  %v2311 = vsel %vm283, %v2234, 0
  %v2314 = vsel %vm283, %v2235, 0
  %v2317 = vsel %vm283, %v2236, 0
  %v2320 = vsel %vm283, %v2237, 0
  %v2323 = vsel %vm283, %v2238, 0
  %v2326 = vsel %vm283, %v2239, 0
  %v2329 = vsel %vm283, %v2240, 0
  %v2332 = vsel %vm283, %v2241, 0
  %v2335 = vsel %vm283, %v2242, 0
  %v2338 = vsel %vm283, %v2243, 0
  %2340 = vmatpush.bf16.msra.mxu0 0
  %2341 = vmatpush.bf16.msra.mxu0 0
  %2342 = vmatpush.bf16.msra.mxu0 0
  %2343 = vmatpush.bf16.msra.mxu0 0
  %2344 = vmatpush.bf16.msra.mxu0 0
  %2345 = vmatpush.bf16.msra.mxu0 %v58
  %2346 = vmatpush.bf16.msra.mxu0 %v57
  %2347 = vmatpush.bf16.msra.mxu0 %v56
  %2348 = vmatmul.bf16.gmra.mxu0 %v2245
  %v2349 = vpop.f32.mrf.mxu0
  %v2350 = vadd.f32 0.0, %v2349
  %v2351 = vpop.f32.mrf.mxu0
  %v2352 = vadd.f32 0.0, %v2351
  %2353 = vmatmul.bf16.gmra.mxu0 %v2248
  %v2354 = vpop.f32.mrf.mxu0
  %v2355 = vadd.f32 0.0, %v2354
  %v2356 = vpop.f32.mrf.mxu0
  %v2357 = vadd.f32 0.0, %v2356
  %2358 = vmatmul.bf16.gmra.mxu0 %v2251
  %v2359 = vpop.f32.mrf.mxu0
  %v2360 = vadd.f32 0.0, %v2359
  %v2361 = vpop.f32.mrf.mxu0
  %v2362 = vadd.f32 0.0, %v2361
  %2363 = vmatmul.bf16.gmra.mxu0 %v2254
  %v2364 = vpop.f32.mrf.mxu0
  %v2365 = vadd.f32 0.0, %v2364
  %v2366 = vpop.f32.mrf.mxu0
  %v2367 = vadd.f32 0.0, %v2366
  %2368 = vmatmul.bf16.gmra.mxu0 %v2257
  %v2369 = vpop.f32.mrf.mxu0
  %v2370 = vadd.f32 0.0, %v2369
  %v2371 = vpop.f32.mrf.mxu0
  %v2372 = vadd.f32 0.0, %v2371
  %2373 = vmatmul.bf16.gmra.mxu0 %v2260
  %v2374 = vpop.f32.mrf.mxu0
  %v2375 = vadd.f32 0.0, %v2374
  %v2376 = vpop.f32.mrf.mxu0
  %v2377 = vadd.f32 0.0, %v2376
  %2378 = vmatmul.bf16.gmra.mxu0 %v2263
  %v2379 = vpop.f32.mrf.mxu0
  %v2380 = vadd.f32 0.0, %v2379
  %v2381 = vpop.f32.mrf.mxu0
  %v2382 = vadd.f32 0.0, %v2381
  %2383 = vmatmul.bf16.gmra.mxu0 %v2266
  %v2384 = vpop.f32.mrf.mxu0
  %v2385 = vadd.f32 0.0, %v2384
  %v2386 = vpop.f32.mrf.mxu0
  %v2387 = vadd.f32 0.0, %v2386
  %2388 = vmatmul.bf16.gmra.mxu0 %v2269
  %v2389 = vpop.f32.mrf.mxu0
  %v2390 = vadd.f32 0.0, %v2389
  %v2391 = vpop.f32.mrf.mxu0
  %v2392 = vadd.f32 0.0, %v2391
  %2393 = vmatmul.bf16.gmra.mxu0 %v2272
  %v2394 = vpop.f32.mrf.mxu0
  %v2395 = vadd.f32 0.0, %v2394
  %v2396 = vpop.f32.mrf.mxu0
  %v2397 = vadd.f32 0.0, %v2396
  %2398 = vmatmul.bf16.gmra.mxu0 %v2275
  %v2399 = vpop.f32.mrf.mxu0
  %v2400 = vadd.f32 0.0, %v2399
  %v2401 = vpop.f32.mrf.mxu0
  %v2402 = vadd.f32 0.0, %v2401
  %2403 = vmatmul.bf16.gmra.mxu0 %v2278
  %v2404 = vpop.f32.mrf.mxu0
  %v2405 = vadd.f32 0.0, %v2404
  %v2406 = vpop.f32.mrf.mxu0
  %v2407 = vadd.f32 0.0, %v2406
  %2408 = vmatmul.bf16.gmra.mxu0 %v2281
  %v2409 = vpop.f32.mrf.mxu0
  %v2410 = vadd.f32 0.0, %v2409
  %v2411 = vpop.f32.mrf.mxu0
  %v2412 = vadd.f32 0.0, %v2411
  %2413 = vmatmul.bf16.gmra.mxu0 %v2284
  %v2414 = vpop.f32.mrf.mxu0
  %v2415 = vadd.f32 0.0, %v2414
  %v2416 = vpop.f32.mrf.mxu0
  %v2417 = vadd.f32 0.0, %v2416
  %2418 = vmatmul.bf16.gmra.mxu0 %v2287
  %v2419 = vpop.f32.mrf.mxu0
  %v2420 = vadd.f32 0.0, %v2419
  %v2421 = vpop.f32.mrf.mxu0
  %v2422 = vadd.f32 0.0, %v2421
  %2423 = vmatmul.bf16.gmra.mxu0 %v2290
  %v2424 = vpop.f32.mrf.mxu0
  %v2425 = vadd.f32 0.0, %v2424
  %v2426 = vpop.f32.mrf.mxu0
  %v2427 = vadd.f32 0.0, %v2426
  %2428 = vmatmul.bf16.gmra.mxu0 %v2293
  %v2429 = vpop.f32.mrf.mxu0
  %v2430 = vadd.f32 0.0, %v2429
  %v2431 = vpop.f32.mrf.mxu0
  %v2432 = vadd.f32 0.0, %v2431
  %2433 = vmatmul.bf16.gmra.mxu0 %v2296
  %v2434 = vpop.f32.mrf.mxu0
  %v2435 = vadd.f32 0.0, %v2434
  %v2436 = vpop.f32.mrf.mxu0
  %v2437 = vadd.f32 0.0, %v2436
  %2438 = vmatmul.bf16.gmra.mxu0 %v2299
  %v2439 = vpop.f32.mrf.mxu0
  %v2440 = vadd.f32 0.0, %v2439
  %v2441 = vpop.f32.mrf.mxu0
  %v2442 = vadd.f32 0.0, %v2441
  %2443 = vmatmul.bf16.gmra.mxu0 %v2302
  %v2444 = vpop.f32.mrf.mxu0
  %v2445 = vadd.f32 0.0, %v2444
  %v2446 = vpop.f32.mrf.mxu0
  %v2447 = vadd.f32 0.0, %v2446
  %2448 = vmatmul.bf16.gmra.mxu0 %v2305
  %v2449 = vpop.f32.mrf.mxu0
  %v2450 = vadd.f32 0.0, %v2449
  %v2451 = vpop.f32.mrf.mxu0
  %v2452 = vadd.f32 0.0, %v2451
  %2453 = vmatmul.bf16.gmra.mxu0 %v2308
  %v2454 = vpop.f32.mrf.mxu0
  %v2455 = vadd.f32 0.0, %v2454
  %v2456 = vpop.f32.mrf.mxu0
  %v2457 = vadd.f32 0.0, %v2456
  %2458 = vmatmul.bf16.gmra.mxu0 %v2311
  %v2459 = vpop.f32.mrf.mxu0
  %v2460 = vadd.f32 0.0, %v2459
  %v2461 = vpop.f32.mrf.mxu0
  %v2462 = vadd.f32 0.0, %v2461
  %2463 = vmatmul.bf16.gmra.mxu0 %v2314
  %v2464 = vpop.f32.mrf.mxu0
  %v2465 = vadd.f32 0.0, %v2464
  %v2466 = vpop.f32.mrf.mxu0
  %v2467 = vadd.f32 0.0, %v2466
  %2468 = vmatmul.bf16.gmra.mxu0 %v2317
  %v2469 = vpop.f32.mrf.mxu0
  %v2470 = vadd.f32 0.0, %v2469
  %v2471 = vpop.f32.mrf.mxu0
  %v2472 = vadd.f32 0.0, %v2471
  %2473 = vmatmul.bf16.gmra.mxu0 %v2320
  %v2474 = vpop.f32.mrf.mxu0
  %v2475 = vadd.f32 0.0, %v2474
  %v2476 = vpop.f32.mrf.mxu0
  %v2477 = vadd.f32 0.0, %v2476
  %2478 = vmatmul.bf16.gmra.mxu0 %v2323
  %v2479 = vpop.f32.mrf.mxu0
  %v2480 = vadd.f32 0.0, %v2479
  %v2481 = vpop.f32.mrf.mxu0
  %v2482 = vadd.f32 0.0, %v2481
  %2483 = vmatmul.bf16.gmra.mxu0 %v2326
  %v2484 = vpop.f32.mrf.mxu0
  %v2485 = vadd.f32 0.0, %v2484
  %v2486 = vpop.f32.mrf.mxu0
  %v2487 = vadd.f32 0.0, %v2486
  %2488 = vmatmul.bf16.gmra.mxu0 %v2329
  %v2489 = vpop.f32.mrf.mxu0
  %v2490 = vadd.f32 0.0, %v2489
  %v2491 = vpop.f32.mrf.mxu0
  %v2492 = vadd.f32 0.0, %v2491
  %2493 = vmatmul.bf16.gmra.mxu0 %v2332
  %v2494 = vpop.f32.mrf.mxu0
  %v2495 = vadd.f32 0.0, %v2494
  %v2496 = vpop.f32.mrf.mxu0
  %v2497 = vadd.f32 0.0, %v2496
  %2498 = vmatmul.bf16.gmra.mxu0 %v2335
  %v2499 = vpop.f32.mrf.mxu0
  %v2500 = vadd.f32 0.0, %v2499
  %v2501 = vpop.f32.mrf.mxu0
  %v2502 = vadd.f32 0.0, %v2501
  %2503 = vmatmul.bf16.gmra.mxu0 %v2338
  %v2504 = vpop.f32.mrf.mxu0
  %v2505 = vadd.f32 0.0, %v2504
  %v2506 = vpop.f32.mrf.mxu0
  %v2507 = vadd.f32 0.0, %v2506
  %2508 = vdwg.mxu0
  %v2509 = vmax.f32 %v2350, 0.0
  %v2510 = vmax.f32 %v2352, 0.0
  %v2511 = vmax.f32 %v2355, 0.0
  %v2512 = vmax.f32 %v2357, 0.0
  %v2513 = vmax.f32 %v2360, 0.0
  %v2514 = vmax.f32 %v2362, 0.0
  %v2515 = vmax.f32 %v2365, 0.0
  %v2516 = vmax.f32 %v2367, 0.0
  %v2517 = vmax.f32 %v2370, 0.0
  %v2518 = vmax.f32 %v2372, 0.0
  %v2519 = vmax.f32 %v2375, 0.0
  %v2520 = vmax.f32 %v2377, 0.0
  %v2521 = vmax.f32 %v2380, 0.0
  %v2522 = vmax.f32 %v2382, 0.0
  %v2523 = vmax.f32 %v2385, 0.0
  %v2524 = vmax.f32 %v2387, 0.0
  %v2525 = vmax.f32 %v2390, 0.0
  %v2526 = vmax.f32 %v2392, 0.0
  %v2527 = vmax.f32 %v2395, 0.0
  %v2528 = vmax.f32 %v2397, 0.0
  %v2529 = vmax.f32 %v2400, 0.0
  %v2530 = vmax.f32 %v2402, 0.0
  %v2531 = vmax.f32 %v2405, 0.0
  %v2532 = vmax.f32 %v2407, 0.0
  %v2533 = vmax.f32 %v2410, 0.0
  %v2534 = vmax.f32 %v2412, 0.0
  %v2535 = vmax.f32 %v2415, 0.0
  %v2536 = vmax.f32 %v2417, 0.0
  %v2537 = vmax.f32 %v2420, 0.0
  %v2538 = vmax.f32 %v2422, 0.0
  %v2539 = vmax.f32 %v2425, 0.0
  %v2540 = vmax.f32 %v2427, 0.0
  %v2541 = vmax.f32 %v2430, 0.0
  %v2542 = vmax.f32 %v2432, 0.0
  %v2543 = vmax.f32 %v2435, 0.0
  %v2544 = vmax.f32 %v2437, 0.0
  %v2545 = vmax.f32 %v2440, 0.0
  %v2546 = vmax.f32 %v2442, 0.0
  %v2547 = vmax.f32 %v2445, 0.0
  %v2548 = vmax.f32 %v2447, 0.0
  %v2549 = vmax.f32 %v2450, 0.0
  %v2550 = vmax.f32 %v2452, 0.0
  %v2551 = vmax.f32 %v2455, 0.0
  %v2552 = vmax.f32 %v2457, 0.0
  %v2553 = vmax.f32 %v2460, 0.0
  %v2554 = vmax.f32 %v2462, 0.0
  %v2555 = vmax.f32 %v2465, 0.0
  %v2556 = vmax.f32 %v2467, 0.0
  %v2557 = vmax.f32 %v2470, 0.0
  %v2558 = vmax.f32 %v2472, 0.0
  %v2559 = vmax.f32 %v2475, 0.0
  %v2560 = vmax.f32 %v2477, 0.0
  %v2561 = vmax.f32 %v2480, 0.0
  %v2562 = vmax.f32 %v2482, 0.0
  %v2563 = vmax.f32 %v2485, 0.0
  %v2564 = vmax.f32 %v2487, 0.0
  %v2565 = vmax.f32 %v2490, 0.0
  %v2566 = vmax.f32 %v2492, 0.0
  %v2567 = vmax.f32 %v2495, 0.0
  %v2568 = vmax.f32 %v2497, 0.0
  %v2569 = vmax.f32 %v2500, 0.0
  %v2570 = vmax.f32 %v2502, 0.0
  %v2571 = vmax.f32 %v2505, 0.0
  %v2572 = vmax.f32 %v2507, 0.0
  %v2573 = vpack.c.bf16 %v2510, %v2509
  %v2574 = vpack.c.bf16 %v2512, %v2511
  %v2575 = vpack.c.bf16 %v2514, %v2513
  %v2576 = vpack.c.bf16 %v2516, %v2515
  %v2577 = vpack.c.bf16 %v2518, %v2517
  %v2578 = vpack.c.bf16 %v2520, %v2519
  %v2579 = vpack.c.bf16 %v2522, %v2521
  %v2580 = vpack.c.bf16 %v2524, %v2523
  %v2581 = vpack.c.bf16 %v2526, %v2525
  %v2582 = vpack.c.bf16 %v2528, %v2527
  %v2583 = vpack.c.bf16 %v2530, %v2529
  %v2584 = vpack.c.bf16 %v2532, %v2531
  %v2585 = vpack.c.bf16 %v2534, %v2533
  %v2586 = vpack.c.bf16 %v2536, %v2535
  %v2587 = vpack.c.bf16 %v2538, %v2537
  %v2588 = vpack.c.bf16 %v2540, %v2539
  %v2589 = vpack.c.bf16 %v2542, %v2541
  %v2590 = vpack.c.bf16 %v2544, %v2543
  %v2591 = vpack.c.bf16 %v2546, %v2545
  %v2592 = vpack.c.bf16 %v2548, %v2547
  %v2593 = vpack.c.bf16 %v2550, %v2549
  %v2594 = vpack.c.bf16 %v2552, %v2551
  %v2595 = vpack.c.bf16 %v2554, %v2553
  %v2596 = vpack.c.bf16 %v2556, %v2555
  %v2597 = vpack.c.bf16 %v2558, %v2557
  %v2598 = vpack.c.bf16 %v2560, %v2559
  %v2599 = vpack.c.bf16 %v2562, %v2561
  %v2600 = vpack.c.bf16 %v2564, %v2563
  %v2601 = vpack.c.bf16 %v2566, %v2565
  %v2602 = vpack.c.bf16 %v2568, %v2567
  %v2603 = vpack.c.bf16 %v2570, %v2569
  %v2604 = vpack.c.bf16 %v2572, %v2571
  %v2605 = vld [vmem:[%s2 + $0x30] sm:$0xff]
  %v2606 = vld [vmem:[%s2 + $0x38] sm:$0xff]
  %v2609 = vunpack.c.l.b16 %v2605
  %v2610 = vunpack.c.h.b16 %v2605
  %v2611 = vunpack.c.l.b16 %v2606
  %v2612 = vunpack.c.h.b16 %v2606
  %v2613 = vpack.c.b16 %v2609, %v2609
  %v2614 = vpack.c.b16 %v2610, %v2610
  %v2615 = vpack.c.b16 %v2611, %v2611
  %v2616 = vpack.c.b16 %v2612, %v2612
  %2621 = vmatpush.bf16.msra.mxu0 %v2580
  %2622 = vmatpush.bf16.msra.mxu0 %v2579
  %2623 = vmatpush.bf16.msra.mxu0 %v2578
  %2624 = vmatpush.bf16.msra.mxu0 %v2577
  %2625 = vmatpush.bf16.msra.mxu0 %v2576
  %2626 = vmatpush.bf16.msra.mxu0 %v2575
  %2627 = vmatpush.bf16.msra.mxu0 %v2574
  %2628 = vmatpush.bf16.msra.mxu0 %v2573
  %2629 = vmatmul.bf16.gmra.mxu0 %v2613
  %v2630 = vpop.f32.mrf.mxu0
  %v2631 = vadd.f32 0.0, %v2630
  %v2632 = vpop.f32.mrf.mxu0
  %2633 = vdwg.mxu0
  %2634 = vmatpush.bf16.msra.mxu0 %v2588
  %2635 = vmatpush.bf16.msra.mxu0 %v2587
  %2636 = vmatpush.bf16.msra.mxu0 %v2586
  %2637 = vmatpush.bf16.msra.mxu0 %v2585
  %2638 = vmatpush.bf16.msra.mxu0 %v2584
  %2639 = vmatpush.bf16.msra.mxu0 %v2583
  %2640 = vmatpush.bf16.msra.mxu0 %v2582
  %2641 = vmatpush.bf16.msra.mxu0 %v2581
  %2642 = vmatmul.bf16.gmra.mxu0 %v2614
  %v2643 = vpop.f32.mrf.mxu0
  %v2644 = vadd.f32 %v2631, %v2643
  %v2645 = vpop.f32.mrf.mxu0
  %2646 = vdwg.mxu0
  %2647 = vmatpush.bf16.msra.mxu0 %v2596
  %2648 = vmatpush.bf16.msra.mxu0 %v2595
  %2649 = vmatpush.bf16.msra.mxu0 %v2594
  %2650 = vmatpush.bf16.msra.mxu0 %v2593
  %2651 = vmatpush.bf16.msra.mxu0 %v2592
  %2652 = vmatpush.bf16.msra.mxu0 %v2591
  %2653 = vmatpush.bf16.msra.mxu0 %v2590
  %2654 = vmatpush.bf16.msra.mxu0 %v2589
  %2655 = vmatmul.bf16.gmra.mxu0 %v2615
  %v2656 = vpop.f32.mrf.mxu0
  %v2657 = vadd.f32 %v2644, %v2656
  %v2658 = vpop.f32.mrf.mxu0
  %2659 = vdwg.mxu0
  %2660 = vmatpush.bf16.msra.mxu0 %v2604
  %2661 = vmatpush.bf16.msra.mxu0 %v2603
  %2662 = vmatpush.bf16.msra.mxu0 %v2602
  %2663 = vmatpush.bf16.msra.mxu0 %v2601
  %2664 = vmatpush.bf16.msra.mxu0 %v2600
  %2665 = vmatpush.bf16.msra.mxu0 %v2599
  %2666 = vmatpush.bf16.msra.mxu0 %v2598
  %2667 = vmatpush.bf16.msra.mxu0 %v2597
  %2668 = vmatmul.bf16.gmra.mxu0 %v2616
  %v2669 = vpop.f32.mrf.mxu0
  %v2670 = vadd.f32 %v2657, %v2669
  %v2671 = vpop.f32.mrf.mxu0
  %2672 = vdwg.mxu0
  %v2673 = vadd.f32 %v2019, %v2670
  %v2674 = vld [vmem:[%s1 + $0x400] sm:$0xf]
  %v2675 = vld [vmem:[%s1 + $0x404] sm:$0xf]
  %v2676 = vld [vmem:[%s1 + $0x408] sm:$0xf]
  %v2677 = vld [vmem:[%s1 + $0x40c] sm:$0xf]
  %v2678 = vld [vmem:[%s1 + $0x410] sm:$0xf]
  %v2679 = vld [vmem:[%s1 + $0x414] sm:$0xf]
  %v2680 = vld [vmem:[%s1 + $0x418] sm:$0xf]
  %v2681 = vld [vmem:[%s1 + $0x41c] sm:$0xf]
  %v2682 = vld [vmem:[%s1 + $0x420] sm:$0xf]
  %v2683 = vld [vmem:[%s1 + $0x424] sm:$0xf]
  %v2684 = vld [vmem:[%s1 + $0x428] sm:$0xf]
  %v2685 = vld [vmem:[%s1 + $0x42c] sm:$0xf]
  %v2686 = vld [vmem:[%s1 + $0x430] sm:$0xf]
  %v2687 = vld [vmem:[%s1 + $0x434] sm:$0xf]
  %v2688 = vld [vmem:[%s1 + $0x438] sm:$0xf]
  %v2689 = vld [vmem:[%s1 + $0x43c] sm:$0xf]
  %v2690 = vld [vmem:[%s1 + $0x440] sm:$0xf]
  %v2691 = vld [vmem:[%s1 + $0x444] sm:$0xf]
  %v2692 = vld [vmem:[%s1 + $0x448] sm:$0xf]
  %v2693 = vld [vmem:[%s1 + $0x44c] sm:$0xf]
  %v2694 = vld [vmem:[%s1 + $0x450] sm:$0xf]
  %v2695 = vld [vmem:[%s1 + $0x454] sm:$0xf]
  %v2696 = vld [vmem:[%s1 + $0x458] sm:$0xf]
  %v2697 = vld [vmem:[%s1 + $0x45c] sm:$0xf]
  %v2698 = vld [vmem:[%s1 + $0x460] sm:$0xf]
  %v2699 = vld [vmem:[%s1 + $0x464] sm:$0xf]
  %v2700 = vld [vmem:[%s1 + $0x468] sm:$0xf]
  %v2701 = vld [vmem:[%s1 + $0x46c] sm:$0xf]
  %v2702 = vld [vmem:[%s1 + $0x470] sm:$0xf]
  %v2703 = vld [vmem:[%s1 + $0x474] sm:$0xf]
  %v2704 = vld [vmem:[%s1 + $0x478] sm:$0xf]
  %v2705 = vld [vmem:[%s1 + $0x47c] sm:$0xf]
  %v2706 = vld [vmem:[%s1 + $0x480] sm:$0xf]
  %v2707 = vld [vmem:[%s1 + $0x484] sm:$0xf]
  %v2708 = vld [vmem:[%s1 + $0x488] sm:$0xf]
  %v2709 = vld [vmem:[%s1 + $0x48c] sm:$0xf]
  %v2710 = vld [vmem:[%s1 + $0x490] sm:$0xf]
  %v2711 = vld [vmem:[%s1 + $0x494] sm:$0xf]
  %v2712 = vld [vmem:[%s1 + $0x498] sm:$0xf]
  %v2713 = vld [vmem:[%s1 + $0x49c] sm:$0xf]
  %v2714 = vld [vmem:[%s1 + $0x4a0] sm:$0xf]
  %v2715 = vld [vmem:[%s1 + $0x4a4] sm:$0xf]
  %v2716 = vld [vmem:[%s1 + $0x4a8] sm:$0xf]
  %v2717 = vld [vmem:[%s1 + $0x4ac] sm:$0xf]
  %v2718 = vld [vmem:[%s1 + $0x4b0] sm:$0xf]
  %v2719 = vld [vmem:[%s1 + $0x4b4] sm:$0xf]
  %v2720 = vld [vmem:[%s1 + $0x4b8] sm:$0xf]
  %v2721 = vld [vmem:[%s1 + $0x4bc] sm:$0xf]
  %v2722 = vld [vmem:[%s1 + $0x4c0] sm:$0xf]
  %v2723 = vld [vmem:[%s1 + $0x4c4] sm:$0xf]
  %v2724 = vld [vmem:[%s1 + $0x4c8] sm:$0xf]
  %v2725 = vld [vmem:[%s1 + $0x4cc] sm:$0xf]
  %v2726 = vld [vmem:[%s1 + $0x4d0] sm:$0xf]
  %v2727 = vld [vmem:[%s1 + $0x4d4] sm:$0xf]
  %v2728 = vld [vmem:[%s1 + $0x4d8] sm:$0xf]
  %v2729 = vld [vmem:[%s1 + $0x4dc] sm:$0xf]
  %v2730 = vld [vmem:[%s1 + $0x4e0] sm:$0xf]
  %v2731 = vld [vmem:[%s1 + $0x4e4] sm:$0xf]
  %v2732 = vld [vmem:[%s1 + $0x4e8] sm:$0xf]
  %v2733 = vld [vmem:[%s1 + $0x4ec] sm:$0xf]
  %v2734 = vld [vmem:[%s1 + $0x4f0] sm:$0xf]
  %v2735 = vld [vmem:[%s1 + $0x4f4] sm:$0xf]
  %v2736 = vld [vmem:[%s1 + $0x4f8] sm:$0xf]
  %v2737 = vld [vmem:[%s1 + $0x4fc] sm:$0xf]
  %v2802 = vunpack.c.l.b16 %v2674
  %v2803 = vunpack.c.l.b16 %v2675
  %v2804 = vunpack.c.l.b16 %v2676
  %v2805 = vunpack.c.l.b16 %v2677
  %v2806 = vunpack.c.l.b16 %v2678
  %v2807 = vunpack.c.l.b16 %v2679
  %v2808 = vunpack.c.l.b16 %v2680
  %v2809 = vunpack.c.l.b16 %v2681
  %v2810 = vunpack.c.l.b16 %v2682
  %v2811 = vunpack.c.l.b16 %v2683
  %v2812 = vunpack.c.l.b16 %v2684
  %v2813 = vunpack.c.l.b16 %v2685
  %v2814 = vunpack.c.l.b16 %v2686
  %v2815 = vunpack.c.l.b16 %v2687
  %v2816 = vunpack.c.l.b16 %v2688
  %v2817 = vunpack.c.l.b16 %v2689
  %v2818 = vunpack.c.l.b16 %v2690
  %v2819 = vunpack.c.l.b16 %v2691
  %v2820 = vunpack.c.l.b16 %v2692
  %v2821 = vunpack.c.l.b16 %v2693
  %v2822 = vunpack.c.l.b16 %v2694
  %v2823 = vunpack.c.l.b16 %v2695
  %v2824 = vunpack.c.l.b16 %v2696
  %v2825 = vunpack.c.l.b16 %v2697
  %v2826 = vunpack.c.l.b16 %v2698
  %v2827 = vunpack.c.l.b16 %v2699
  %v2828 = vunpack.c.l.b16 %v2700
  %v2829 = vunpack.c.l.b16 %v2701
  %v2830 = vunpack.c.l.b16 %v2702
  %v2831 = vunpack.c.l.b16 %v2703
  %v2832 = vunpack.c.l.b16 %v2704
  %v2833 = vunpack.c.l.b16 %v2705
  %v2834 = vunpack.c.l.b16 %v2706
  %v2835 = vunpack.c.l.b16 %v2707
  %v2836 = vunpack.c.l.b16 %v2708
  %v2837 = vunpack.c.l.b16 %v2709
  %v2838 = vunpack.c.l.b16 %v2710
  %v2839 = vunpack.c.l.b16 %v2711
  %v2840 = vunpack.c.l.b16 %v2712
  %v2841 = vunpack.c.l.b16 %v2713
  %v2842 = vunpack.c.l.b16 %v2714
  %v2843 = vunpack.c.l.b16 %v2715
  %v2844 = vunpack.c.l.b16 %v2716
  %v2845 = vunpack.c.l.b16 %v2717
  %v2846 = vunpack.c.l.b16 %v2718
  %v2847 = vunpack.c.l.b16 %v2719
  %v2848 = vunpack.c.l.b16 %v2720
  %v2849 = vunpack.c.l.b16 %v2721
  %v2850 = vunpack.c.l.b16 %v2722
  %v2851 = vunpack.c.l.b16 %v2723
  %v2852 = vunpack.c.l.b16 %v2724
  %v2853 = vunpack.c.l.b16 %v2725
  %v2854 = vunpack.c.l.b16 %v2726
  %v2855 = vunpack.c.l.b16 %v2727
  %v2856 = vunpack.c.l.b16 %v2728
  %v2857 = vunpack.c.l.b16 %v2729
  %v2858 = vunpack.c.l.b16 %v2730
  %v2859 = vunpack.c.l.b16 %v2731
  %v2860 = vunpack.c.l.b16 %v2732
  %v2861 = vunpack.c.l.b16 %v2733
  %v2862 = vunpack.c.l.b16 %v2734
  %v2863 = vunpack.c.l.b16 %v2735
  %v2864 = vunpack.c.l.b16 %v2736
  %v2865 = vunpack.c.l.b16 %v2737
  %v2866 = vpack.c.b16 %v2803, %v2802
  %v2867 = vpack.c.b16 %v2805, %v2804
  %v2868 = vpack.c.b16 %v2807, %v2806
  %v2869 = vpack.c.b16 %v2809, %v2808
  %v2870 = vpack.c.b16 %v2811, %v2810
  %v2871 = vpack.c.b16 %v2813, %v2812
  %v2872 = vpack.c.b16 %v2815, %v2814
  %v2873 = vpack.c.b16 %v2817, %v2816
  %v2874 = vpack.c.b16 %v2819, %v2818
  %v2875 = vpack.c.b16 %v2821, %v2820
  %v2876 = vpack.c.b16 %v2823, %v2822
  %v2877 = vpack.c.b16 %v2825, %v2824
  %v2878 = vpack.c.b16 %v2827, %v2826
  %v2879 = vpack.c.b16 %v2829, %v2828
  %v2880 = vpack.c.b16 %v2831, %v2830
  %v2881 = vpack.c.b16 %v2833, %v2832
  %v2882 = vpack.c.b16 %v2835, %v2834
  %v2883 = vpack.c.b16 %v2837, %v2836
  %v2884 = vpack.c.b16 %v2839, %v2838
  %v2885 = vpack.c.b16 %v2841, %v2840
  %v2886 = vpack.c.b16 %v2843, %v2842
  %v2887 = vpack.c.b16 %v2845, %v2844
  %v2888 = vpack.c.b16 %v2847, %v2846
  %v2889 = vpack.c.b16 %v2849, %v2848
  %v2890 = vpack.c.b16 %v2851, %v2850
  %v2891 = vpack.c.b16 %v2853, %v2852
  %v2892 = vpack.c.b16 %v2855, %v2854
  %v2893 = vpack.c.b16 %v2857, %v2856
  %v2894 = vpack.c.b16 %v2859, %v2858
  %v2895 = vpack.c.b16 %v2861, %v2860
  %v2896 = vpack.c.b16 %v2863, %v2862
  %v2897 = vpack.c.b16 %v2865, %v2864
  %v2899 = vsel %vm283, %v2866, 0
  %v2902 = vsel %vm283, %v2867, 0
  %v2905 = vsel %vm283, %v2868, 0
  %v2908 = vsel %vm283, %v2869, 0
  %v2911 = vsel %vm283, %v2870, 0
  %v2914 = vsel %vm283, %v2871, 0
  %v2917 = vsel %vm283, %v2872, 0
  %v2920 = vsel %vm283, %v2873, 0
  %v2923 = vsel %vm283, %v2874, 0
  %v2926 = vsel %vm283, %v2875, 0
  %v2929 = vsel %vm283, %v2876, 0
  %v2932 = vsel %vm283, %v2877, 0
  %v2935 = vsel %vm283, %v2878, 0
  %v2938 = vsel %vm283, %v2879, 0
  %v2941 = vsel %vm283, %v2880, 0
  %v2944 = vsel %vm283, %v2881, 0
  %v2947 = vsel %vm283, %v2882, 0
  %v2950 = vsel %vm283, %v2883, 0
  %v2953 = vsel %vm283, %v2884, 0
  %v2956 = vsel %vm283, %v2885, 0
  %v2959 = vsel %vm283, %v2886, 0
  %v2962 = vsel %vm283, %v2887, 0
  %v2965 = vsel %vm283, %v2888, 0
  %v2968 = vsel %vm283, %v2889, 0
  %v2971 = vsel %vm283, %v2890, 0
  %v2974 = vsel %vm283, %v2891, 0
  %v2977 = vsel %vm283, %v2892, 0
  %v2980 = vsel %vm283, %v2893, 0
  %v2983 = vsel %vm283, %v2894, 0
  %v2986 = vsel %vm283, %v2895, 0
  %v2989 = vsel %vm283, %v2896, 0
  %v2992 = vsel %vm283, %v2897, 0
  %2994 = vmatpush.bf16.msra.mxu0 0
  %2995 = vmatpush.bf16.msra.mxu0 0
  %2996 = vmatpush.bf16.msra.mxu0 0
  %2997 = vmatpush.bf16.msra.mxu0 0
  %2998 = vmatpush.bf16.msra.mxu0 0
  %2999 = vmatpush.bf16.msra.mxu0 %v58
  %3000 = vmatpush.bf16.msra.mxu0 %v57
  %3001 = vmatpush.bf16.msra.mxu0 %v56
  %3002 = vmatmul.bf16.gmra.mxu0 %v2899
  %v3003 = vpop.f32.mrf.mxu0
  %v3004 = vadd.f32 0.0, %v3003
  %v3005 = vpop.f32.mrf.mxu0
  %v3006 = vadd.f32 0.0, %v3005
  %3007 = vmatmul.bf16.gmra.mxu0 %v2902
  %v3008 = vpop.f32.mrf.mxu0
  %v3009 = vadd.f32 0.0, %v3008
  %v3010 = vpop.f32.mrf.mxu0
  %v3011 = vadd.f32 0.0, %v3010
  %3012 = vmatmul.bf16.gmra.mxu0 %v2905
  %v3013 = vpop.f32.mrf.mxu0
  %v3014 = vadd.f32 0.0, %v3013
  %v3015 = vpop.f32.mrf.mxu0
  %v3016 = vadd.f32 0.0, %v3015
  %3017 = vmatmul.bf16.gmra.mxu0 %v2908
  %v3018 = vpop.f32.mrf.mxu0
  %v3019 = vadd.f32 0.0, %v3018
  %v3020 = vpop.f32.mrf.mxu0
  %v3021 = vadd.f32 0.0, %v3020
  %3022 = vmatmul.bf16.gmra.mxu0 %v2911
  %v3023 = vpop.f32.mrf.mxu0
  %v3024 = vadd.f32 0.0, %v3023
  %v3025 = vpop.f32.mrf.mxu0
  %v3026 = vadd.f32 0.0, %v3025
  %3027 = vmatmul.bf16.gmra.mxu0 %v2914
  %v3028 = vpop.f32.mrf.mxu0
  %v3029 = vadd.f32 0.0, %v3028
  %v3030 = vpop.f32.mrf.mxu0
  %v3031 = vadd.f32 0.0, %v3030
  %3032 = vmatmul.bf16.gmra.mxu0 %v2917
  %v3033 = vpop.f32.mrf.mxu0
  %v3034 = vadd.f32 0.0, %v3033
  %v3035 = vpop.f32.mrf.mxu0
  %v3036 = vadd.f32 0.0, %v3035
  %3037 = vmatmul.bf16.gmra.mxu0 %v2920
  %v3038 = vpop.f32.mrf.mxu0
  %v3039 = vadd.f32 0.0, %v3038
  %v3040 = vpop.f32.mrf.mxu0
  %v3041 = vadd.f32 0.0, %v3040
  %3042 = vmatmul.bf16.gmra.mxu0 %v2923
  %v3043 = vpop.f32.mrf.mxu0
  %v3044 = vadd.f32 0.0, %v3043
  %v3045 = vpop.f32.mrf.mxu0
  %v3046 = vadd.f32 0.0, %v3045
  %3047 = vmatmul.bf16.gmra.mxu0 %v2926
  %v3048 = vpop.f32.mrf.mxu0
  %v3049 = vadd.f32 0.0, %v3048
  %v3050 = vpop.f32.mrf.mxu0
  %v3051 = vadd.f32 0.0, %v3050
  %3052 = vmatmul.bf16.gmra.mxu0 %v2929
  %v3053 = vpop.f32.mrf.mxu0
  %v3054 = vadd.f32 0.0, %v3053
  %v3055 = vpop.f32.mrf.mxu0
  %v3056 = vadd.f32 0.0, %v3055
  %3057 = vmatmul.bf16.gmra.mxu0 %v2932
  %v3058 = vpop.f32.mrf.mxu0
  %v3059 = vadd.f32 0.0, %v3058
  %v3060 = vpop.f32.mrf.mxu0
  %v3061 = vadd.f32 0.0, %v3060
  %3062 = vmatmul.bf16.gmra.mxu0 %v2935
  %v3063 = vpop.f32.mrf.mxu0
  %v3064 = vadd.f32 0.0, %v3063
  %v3065 = vpop.f32.mrf.mxu0
  %v3066 = vadd.f32 0.0, %v3065
  %3067 = vmatmul.bf16.gmra.mxu0 %v2938
  %v3068 = vpop.f32.mrf.mxu0
  %v3069 = vadd.f32 0.0, %v3068
  %v3070 = vpop.f32.mrf.mxu0
  %v3071 = vadd.f32 0.0, %v3070
  %3072 = vmatmul.bf16.gmra.mxu0 %v2941
  %v3073 = vpop.f32.mrf.mxu0
  %v3074 = vadd.f32 0.0, %v3073
  %v3075 = vpop.f32.mrf.mxu0
  %v3076 = vadd.f32 0.0, %v3075
  %3077 = vmatmul.bf16.gmra.mxu0 %v2944
  %v3078 = vpop.f32.mrf.mxu0
  %v3079 = vadd.f32 0.0, %v3078
  %v3080 = vpop.f32.mrf.mxu0
  %v3081 = vadd.f32 0.0, %v3080
  %3082 = vmatmul.bf16.gmra.mxu0 %v2947
  %v3083 = vpop.f32.mrf.mxu0
  %v3084 = vadd.f32 0.0, %v3083
  %v3085 = vpop.f32.mrf.mxu0
  %v3086 = vadd.f32 0.0, %v3085
  %3087 = vmatmul.bf16.gmra.mxu0 %v2950
  %v3088 = vpop.f32.mrf.mxu0
  %v3089 = vadd.f32 0.0, %v3088
  %v3090 = vpop.f32.mrf.mxu0
  %v3091 = vadd.f32 0.0, %v3090
  %3092 = vmatmul.bf16.gmra.mxu0 %v2953
  %v3093 = vpop.f32.mrf.mxu0
  %v3094 = vadd.f32 0.0, %v3093
  %v3095 = vpop.f32.mrf.mxu0
  %v3096 = vadd.f32 0.0, %v3095
  %3097 = vmatmul.bf16.gmra.mxu0 %v2956
  %v3098 = vpop.f32.mrf.mxu0
  %v3099 = vadd.f32 0.0, %v3098
  %v3100 = vpop.f32.mrf.mxu0
  %v3101 = vadd.f32 0.0, %v3100
  %3102 = vmatmul.bf16.gmra.mxu0 %v2959
  %v3103 = vpop.f32.mrf.mxu0
  %v3104 = vadd.f32 0.0, %v3103
  %v3105 = vpop.f32.mrf.mxu0
  %v3106 = vadd.f32 0.0, %v3105
  %3107 = vmatmul.bf16.gmra.mxu0 %v2962
  %v3108 = vpop.f32.mrf.mxu0
  %v3109 = vadd.f32 0.0, %v3108
  %v3110 = vpop.f32.mrf.mxu0
  %v3111 = vadd.f32 0.0, %v3110
  %3112 = vmatmul.bf16.gmra.mxu0 %v2965
  %v3113 = vpop.f32.mrf.mxu0
  %v3114 = vadd.f32 0.0, %v3113
  %v3115 = vpop.f32.mrf.mxu0
  %v3116 = vadd.f32 0.0, %v3115
  %3117 = vmatmul.bf16.gmra.mxu0 %v2968
  %v3118 = vpop.f32.mrf.mxu0
  %v3119 = vadd.f32 0.0, %v3118
  %v3120 = vpop.f32.mrf.mxu0
  %v3121 = vadd.f32 0.0, %v3120
  %3122 = vmatmul.bf16.gmra.mxu0 %v2971
  %v3123 = vpop.f32.mrf.mxu0
  %v3124 = vadd.f32 0.0, %v3123
  %v3125 = vpop.f32.mrf.mxu0
  %v3126 = vadd.f32 0.0, %v3125
  %3127 = vmatmul.bf16.gmra.mxu0 %v2974
  %v3128 = vpop.f32.mrf.mxu0
  %v3129 = vadd.f32 0.0, %v3128
  %v3130 = vpop.f32.mrf.mxu0
  %v3131 = vadd.f32 0.0, %v3130
  %3132 = vmatmul.bf16.gmra.mxu0 %v2977
  %v3133 = vpop.f32.mrf.mxu0
  %v3134 = vadd.f32 0.0, %v3133
  %v3135 = vpop.f32.mrf.mxu0
  %v3136 = vadd.f32 0.0, %v3135
  %3137 = vmatmul.bf16.gmra.mxu0 %v2980
  %v3138 = vpop.f32.mrf.mxu0
  %v3139 = vadd.f32 0.0, %v3138
  %v3140 = vpop.f32.mrf.mxu0
  %v3141 = vadd.f32 0.0, %v3140
  %3142 = vmatmul.bf16.gmra.mxu0 %v2983
  %v3143 = vpop.f32.mrf.mxu0
  %v3144 = vadd.f32 0.0, %v3143
  %v3145 = vpop.f32.mrf.mxu0
  %v3146 = vadd.f32 0.0, %v3145
  %3147 = vmatmul.bf16.gmra.mxu0 %v2986
  %v3148 = vpop.f32.mrf.mxu0
  %v3149 = vadd.f32 0.0, %v3148
  %v3150 = vpop.f32.mrf.mxu0
  %v3151 = vadd.f32 0.0, %v3150
  %3152 = vmatmul.bf16.gmra.mxu0 %v2989
  %v3153 = vpop.f32.mrf.mxu0
  %v3154 = vadd.f32 0.0, %v3153
  %v3155 = vpop.f32.mrf.mxu0
  %v3156 = vadd.f32 0.0, %v3155
  %3157 = vmatmul.bf16.gmra.mxu0 %v2992
  %v3158 = vpop.f32.mrf.mxu0
  %v3159 = vadd.f32 0.0, %v3158
  %v3160 = vpop.f32.mrf.mxu0
  %v3161 = vadd.f32 0.0, %v3160
  %3162 = vdwg.mxu0
  %v3163 = vmax.f32 %v3004, 0.0
  %v3164 = vmax.f32 %v3006, 0.0
  %v3165 = vmax.f32 %v3009, 0.0
  %v3166 = vmax.f32 %v3011, 0.0
  %v3167 = vmax.f32 %v3014, 0.0
  %v3168 = vmax.f32 %v3016, 0.0
  %v3169 = vmax.f32 %v3019, 0.0
  %v3170 = vmax.f32 %v3021, 0.0
  %v3171 = vmax.f32 %v3024, 0.0
  %v3172 = vmax.f32 %v3026, 0.0
  %v3173 = vmax.f32 %v3029, 0.0
  %v3174 = vmax.f32 %v3031, 0.0
  %v3175 = vmax.f32 %v3034, 0.0
  %v3176 = vmax.f32 %v3036, 0.0
  %v3177 = vmax.f32 %v3039, 0.0
  %v3178 = vmax.f32 %v3041, 0.0
  %v3179 = vmax.f32 %v3044, 0.0
  %v3180 = vmax.f32 %v3046, 0.0
  %v3181 = vmax.f32 %v3049, 0.0
  %v3182 = vmax.f32 %v3051, 0.0
  %v3183 = vmax.f32 %v3054, 0.0
  %v3184 = vmax.f32 %v3056, 0.0
  %v3185 = vmax.f32 %v3059, 0.0
  %v3186 = vmax.f32 %v3061, 0.0
  %v3187 = vmax.f32 %v3064, 0.0
  %v3188 = vmax.f32 %v3066, 0.0
  %v3189 = vmax.f32 %v3069, 0.0
  %v3190 = vmax.f32 %v3071, 0.0
  %v3191 = vmax.f32 %v3074, 0.0
  %v3192 = vmax.f32 %v3076, 0.0
  %v3193 = vmax.f32 %v3079, 0.0
  %v3194 = vmax.f32 %v3081, 0.0
  %v3195 = vmax.f32 %v3084, 0.0
  %v3196 = vmax.f32 %v3086, 0.0
  %v3197 = vmax.f32 %v3089, 0.0
  %v3198 = vmax.f32 %v3091, 0.0
  %v3199 = vmax.f32 %v3094, 0.0
  %v3200 = vmax.f32 %v3096, 0.0
  %v3201 = vmax.f32 %v3099, 0.0
  %v3202 = vmax.f32 %v3101, 0.0
  %v3203 = vmax.f32 %v3104, 0.0
  %v3204 = vmax.f32 %v3106, 0.0
  %v3205 = vmax.f32 %v3109, 0.0
  %v3206 = vmax.f32 %v3111, 0.0
  %v3207 = vmax.f32 %v3114, 0.0
  %v3208 = vmax.f32 %v3116, 0.0
  %v3209 = vmax.f32 %v3119, 0.0
  %v3210 = vmax.f32 %v3121, 0.0
  %v3211 = vmax.f32 %v3124, 0.0
  %v3212 = vmax.f32 %v3126, 0.0
  %v3213 = vmax.f32 %v3129, 0.0
  %v3214 = vmax.f32 %v3131, 0.0
  %v3215 = vmax.f32 %v3134, 0.0
  %v3216 = vmax.f32 %v3136, 0.0
  %v3217 = vmax.f32 %v3139, 0.0
  %v3218 = vmax.f32 %v3141, 0.0
  %v3219 = vmax.f32 %v3144, 0.0
  %v3220 = vmax.f32 %v3146, 0.0
  %v3221 = vmax.f32 %v3149, 0.0
  %v3222 = vmax.f32 %v3151, 0.0
  %v3223 = vmax.f32 %v3154, 0.0
  %v3224 = vmax.f32 %v3156, 0.0
  %v3225 = vmax.f32 %v3159, 0.0
  %v3226 = vmax.f32 %v3161, 0.0
  %v3227 = vpack.c.bf16 %v3164, %v3163
  %v3228 = vpack.c.bf16 %v3166, %v3165
  %v3229 = vpack.c.bf16 %v3168, %v3167
  %v3230 = vpack.c.bf16 %v3170, %v3169
  %v3231 = vpack.c.bf16 %v3172, %v3171
  %v3232 = vpack.c.bf16 %v3174, %v3173
  %v3233 = vpack.c.bf16 %v3176, %v3175
  %v3234 = vpack.c.bf16 %v3178, %v3177
  %v3235 = vpack.c.bf16 %v3180, %v3179
  %v3236 = vpack.c.bf16 %v3182, %v3181
  %v3237 = vpack.c.bf16 %v3184, %v3183
  %v3238 = vpack.c.bf16 %v3186, %v3185
  %v3239 = vpack.c.bf16 %v3188, %v3187
  %v3240 = vpack.c.bf16 %v3190, %v3189
  %v3241 = vpack.c.bf16 %v3192, %v3191
  %v3242 = vpack.c.bf16 %v3194, %v3193
  %v3243 = vpack.c.bf16 %v3196, %v3195
  %v3244 = vpack.c.bf16 %v3198, %v3197
  %v3245 = vpack.c.bf16 %v3200, %v3199
  %v3246 = vpack.c.bf16 %v3202, %v3201
  %v3247 = vpack.c.bf16 %v3204, %v3203
  %v3248 = vpack.c.bf16 %v3206, %v3205
  %v3249 = vpack.c.bf16 %v3208, %v3207
  %v3250 = vpack.c.bf16 %v3210, %v3209
  %v3251 = vpack.c.bf16 %v3212, %v3211
  %v3252 = vpack.c.bf16 %v3214, %v3213
  %v3253 = vpack.c.bf16 %v3216, %v3215
  %v3254 = vpack.c.bf16 %v3218, %v3217
  %v3255 = vpack.c.bf16 %v3220, %v3219
  %v3256 = vpack.c.bf16 %v3222, %v3221
  %v3257 = vpack.c.bf16 %v3224, %v3223
  %v3258 = vpack.c.bf16 %v3226, %v3225
  %v3259 = vld [vmem:[%s2 + $0x40] sm:$0xff]
  %v3260 = vld [vmem:[%s2 + $0x48] sm:$0xff]
  %v3263 = vunpack.c.l.b16 %v3259
  %v3264 = vunpack.c.h.b16 %v3259
  %v3265 = vunpack.c.l.b16 %v3260
  %v3266 = vunpack.c.h.b16 %v3260
  %v3267 = vpack.c.b16 %v3263, %v3263
  %v3268 = vpack.c.b16 %v3264, %v3264
  %v3269 = vpack.c.b16 %v3265, %v3265
  %v3270 = vpack.c.b16 %v3266, %v3266
  %3275 = vmatpush.bf16.msra.mxu0 %v3234
  %3276 = vmatpush.bf16.msra.mxu0 %v3233
  %3277 = vmatpush.bf16.msra.mxu0 %v3232
  %3278 = vmatpush.bf16.msra.mxu0 %v3231
  %3279 = vmatpush.bf16.msra.mxu0 %v3230
  %3280 = vmatpush.bf16.msra.mxu0 %v3229
  %3281 = vmatpush.bf16.msra.mxu0 %v3228
  %3282 = vmatpush.bf16.msra.mxu0 %v3227
  %3283 = vmatmul.bf16.gmra.mxu0 %v3267
  %v3284 = vpop.f32.mrf.mxu0
  %v3285 = vadd.f32 0.0, %v3284
  %v3286 = vpop.f32.mrf.mxu0
  %3287 = vdwg.mxu0
  %3288 = vmatpush.bf16.msra.mxu0 %v3242
  %3289 = vmatpush.bf16.msra.mxu0 %v3241
  %3290 = vmatpush.bf16.msra.mxu0 %v3240
  %3291 = vmatpush.bf16.msra.mxu0 %v3239
  %3292 = vmatpush.bf16.msra.mxu0 %v3238
  %3293 = vmatpush.bf16.msra.mxu0 %v3237
  %3294 = vmatpush.bf16.msra.mxu0 %v3236
  %3295 = vmatpush.bf16.msra.mxu0 %v3235
  %3296 = vmatmul.bf16.gmra.mxu0 %v3268
  %v3297 = vpop.f32.mrf.mxu0
  %v3298 = vadd.f32 %v3285, %v3297
  %v3299 = vpop.f32.mrf.mxu0
  %3300 = vdwg.mxu0
  %3301 = vmatpush.bf16.msra.mxu0 %v3250
  %3302 = vmatpush.bf16.msra.mxu0 %v3249
  %3303 = vmatpush.bf16.msra.mxu0 %v3248
  %3304 = vmatpush.bf16.msra.mxu0 %v3247
  %3305 = vmatpush.bf16.msra.mxu0 %v3246
  %3306 = vmatpush.bf16.msra.mxu0 %v3245
  %3307 = vmatpush.bf16.msra.mxu0 %v3244
  %3308 = vmatpush.bf16.msra.mxu0 %v3243
  %3309 = vmatmul.bf16.gmra.mxu0 %v3269
  %v3310 = vpop.f32.mrf.mxu0
  %v3311 = vadd.f32 %v3298, %v3310
  %v3312 = vpop.f32.mrf.mxu0
  %3313 = vdwg.mxu0
  %3314 = vmatpush.bf16.msra.mxu0 %v3258
  %3315 = vmatpush.bf16.msra.mxu0 %v3257
  %3316 = vmatpush.bf16.msra.mxu0 %v3256
  %3317 = vmatpush.bf16.msra.mxu0 %v3255
  %3318 = vmatpush.bf16.msra.mxu0 %v3254
  %3319 = vmatpush.bf16.msra.mxu0 %v3253
  %3320 = vmatpush.bf16.msra.mxu0 %v3252
  %3321 = vmatpush.bf16.msra.mxu0 %v3251
  %3322 = vmatmul.bf16.gmra.mxu0 %v3270
  %v3323 = vpop.f32.mrf.mxu0
  %v3324 = vadd.f32 %v3311, %v3323
  %v3325 = vpop.f32.mrf.mxu0
  %3326 = vdwg.mxu0
  %v3327 = vadd.f32 %v2673, %v3324
  %v3328 = vld [vmem:[%s3] sm:$0xff]
  %3330 = vset.pattern.permute.xlu0 0
  %3331 = vperm.xlu0 %3330, %v3328
  %v3332 = vpop.permute.xlu0 %3331
  %v3334 = vadd.f32 %v3327, %v3332
  %vm3335 = vcmask 15360
  %3336 = vst.msk [vmem:[%s4] sm:$0xff] %vm3335, %v3334
  // Predicated region
  $region18: #{tpu_custom_call.1} parent=0 // pred_check
    _
  $region19: #{tpu_custom_call.1} parent=0 // pred_check_branch
    %3338 = sbr.rel (0) target = $region21
  $region20: #{tpu_custom_call.1} parent=0 // pred_region
    _
  $region21: #{tpu_custom_call.1} parent=0 // pred_fallthru
    _
  // Predicated region
  $region22: #{tpu_custom_call.1} parent=0 // pred_check
    _
  $region23: #{tpu_custom_call.1} parent=0 // pred_check_branch
    %3340 = sbr.rel (0) target = $region25
  $region24: #{tpu_custom_call.1} parent=0 // pred_region
    _
  $region25: #{tpu_custom_call.1} parent=0 // pred_fallthru
    _

</llo_original>
